<compile_context>
chip_gen: v7x
topology: tpu7x:2x2x1
jax: 0.10.0
libtpu: 0.0.40
codegen_flags: <defaults>
</compile_context>

<pallas_src>
import jax
import jax.numpy as jnp
from jax.experimental import pallas as pl
from jax.experimental.pallas import tpu as pltpu

# Small shapes consistent with the module (scaled-down image, same hidden dims).
IMAGE_SIZE = (32, 16)                              # (H, W) -- scaled down from (256, 128)
IN_FEATURES = 3 * IMAGE_SIZE[0] * IMAGE_SIZE[1]    # 1536
HIDDEN1 = 256
HIDDEN2 = 128
NUM_CLASSES = 10
OUT_PADDED = 128                                   # lane-dense padded logits width
BATCH = 2


def mlp_kernel(x_ref, w1_ref, b1_ref, w2_ref, b2_ref, w3_ref, b3_ref, o_ref):
    # f32 -> bf16 cast fused into the kernel (VPU cast slots are idle; avoids a
    # separate XLA convert pass over x in HBM).
    x = x_ref[...].astype(jnp.bfloat16)
    # Layer 1: Linear(IN_FEATURES, 256) + ReLU  (bf16 operands, f32 accumulate)
    h1 = jnp.dot(x, w1_ref[...], preferred_element_type=jnp.float32)
    h1 = jnp.maximum(h1 + b1_ref[...], 0.0).astype(jnp.bfloat16)
    # Layer 2: Linear(256, 128) + ReLU
    h2 = jnp.dot(h1, w2_ref[...], preferred_element_type=jnp.float32)
    h2 = jnp.maximum(h2 + b2_ref[...], 0.0).astype(jnp.bfloat16)
    # Layer 3: Linear(128, OUT_PADDED)  (columns beyond NUM_CLASSES are zero)
    out = jnp.dot(h2, w3_ref[...], preferred_element_type=jnp.float32)
    o_ref[...] = (out + b3_ref[...]).astype(o_ref.dtype)


def _cost_estimate(batch):
    flops = 2 * batch * (IN_FEATURES * HIDDEN1 + HIDDEN1 * HIDDEN2 + HIDDEN2 * OUT_PADDED)
    weight_bytes = 2 * (IN_FEATURES * HIDDEN1 + HIDDEN1 * HIDDEN2 + HIDDEN2 * OUT_PADDED)
    bias_bytes = 4 * (HIDDEN1 + HIDDEN2 + OUT_PADDED)
    io_bytes = 4 * batch * (IN_FEATURES + OUT_PADDED)
    return pl.CostEstimate(flops=flops, transcendentals=0,
                           bytes_accessed=weight_bytes + bias_bytes + io_bytes)


def _pick_tile_m(batch):
    # Small batches (<= 256 rows): single grid-less call.  This regime is
    # launch/DMA-latency bound; a 1-step grid only adds pipeline prologue/epilogue.
    if batch <= 256:
        return None
    # Big batches: >= 2 tiles so the "parallel" batch axis gives both v7x
    # TensorCores work; 256-row tiles fill the v6e/v7x 256x256 MXU (on v5e either
    # value is fine -- bigger tiles just amortize the ~0.35us per-step overhead).
    return 256 if batch >= 512 else 128


def simple_nn_forward(x_nchw, params):
    """x_nchw: (B, 3, H, W) float32.  Returns (B, NUM_CLASSES) float32 logits."""
    w1, b1, w2, b2, w3, b3 = params
    B = x_nchw.shape[0]

    # nn.Flatten(): (B, C, H, W) -> (B, C*H*W), row-major over (C, H, W).
    # Contiguous reshape (no HBM pass); bf16 cast happens inside the kernel.
    x = x_nchw.reshape(B, -1)

    tile_m = _pick_tile_m(B)
    cost = _cost_estimate(B)

    if tile_m is None:
        # Degenerate single-tile case: no grid, full-array blocks copied to VMEM.
        out = pl.pallas_call(
            mlp_kernel,
            out_shape=jax.ShapeDtypeStruct((B, OUT_PADDED), jnp.float32),
            cost_estimate=cost,
        )(x, w1, b1, w2, b2, w3, b3)
    else:
        # Batch-tiled 1-D grid.  Ragged last block (B % tile_m != 0) is handled by
        # Pallas: out-of-bounds rows are padding on read and discarded on write,
        # and rows are independent, so no jnp.pad copy of x is needed.
        def resident(a):
            # Weights/biases: constant block index, fetched once, single-buffered.
            return pl.BlockSpec(a.shape, lambda i: (0, 0),
                                pipeline_mode=pl.Buffered(1))

        out = pl.pallas_call(
            mlp_kernel,
            out_shape=jax.ShapeDtypeStruct((B, OUT_PADDED), jnp.float32),
            grid=(pl.cdiv(B, tile_m),),
            in_specs=[
                pl.BlockSpec((tile_m, IN_FEATURES), lambda i: (i, 0)),
                resident(w1), resident(b1),
                resident(w2), resident(b2),
                resident(w3), resident(b3),
            ],
            out_specs=pl.BlockSpec((tile_m, OUT_PADDED), lambda i: (i, 0)),
            compiler_params=pltpu.CompilerParams(dimension_semantics=("parallel",)),
            cost_estimate=cost,
        )(x, w1, b1, w2, b2, w3, b3)

    return out[:B, :NUM_CLASSES]


def init_params(key):
    """Deterministic parameter init matching the module's layer shapes.

    Torch nn.Linear stores weight as (out, in); we store the transpose (in, out)
    so the kernel does x @ W.  Weights are bf16 (MXU native), biases f32 rows.
    w3/b3 are zero-padded from NUM_CLASSES to OUT_PADDED lanes.
    """
    k1, k2, k3, k4, k5, k6 = jax.random.split(key, 6)

    def uni(k, shape, fan_in):
        bound = 1.0 / jnp.sqrt(fan_in)
        return jax.random.uniform(k, shape, jnp.float32, -bound, bound)

    w1 = uni(k1, (IN_FEATURES, HIDDEN1), IN_FEATURES).astype(jnp.bfloat16)
    b1 = uni(k2, (1, HIDDEN1), IN_FEATURES)
    w2 = uni(k3, (HIDDEN1, HIDDEN2), HIDDEN1).astype(jnp.bfloat16)
    b2 = uni(k4, (1, HIDDEN2), HIDDEN1)
    w3 = uni(k5, (HIDDEN2, NUM_CLASSES), HIDDEN2).astype(jnp.bfloat16)
    b3 = uni(k6, (1, NUM_CLASSES), HIDDEN2)
    # Zero-pad the last layer to a lane-dense 128-wide output.
    w3 = jnp.pad(w3, ((0, 0), (0, OUT_PADDED - NUM_CLASSES)))
    b3 = jnp.pad(b3, ((0, 0), (0, OUT_PADDED - NUM_CLASSES)))
    return (w1, b1, w2, b2, w3, b3)


if __name__ == "__main__":
    key = jax.random.PRNGKey(0)
    kx, kp = jax.random.split(key)

    x = jax.random.normal(kx, (BATCH, 3, IMAGE_SIZE[0], IMAGE_SIZE[1]), jnp.float32)
    params = init_params(kp)

    out = simple_nn_forward(x, params)
    out = jax.block_until_ready(out)

    # Reference check with plain JAX using the same bf16 weights / f32 accumulation.
    w1, b1, w2, b2, w3, b3 = params
    xf = x.reshape(BATCH, -1).astype(jnp.bfloat16)
    h1 = jnp.maximum(jnp.dot(xf, w1, preferred_element_type=jnp.float32) + b1, 0.0)
    h2 = jnp.maximum(
        jnp.dot(h1.astype(jnp.bfloat16), w2, preferred_element_type=jnp.float32) + b2, 0.0)
    ref = jnp.dot(h2.astype(jnp.bfloat16), w3, preferred_element_type=jnp.float32) + b3
    ref = ref[:, :NUM_CLASSES]

    assert out.shape == (BATCH, NUM_CLASSES)
    assert jnp.allclose(out, ref, atol=1e-2, rtol=1e-2)

    print("KERNEL_OK")
</pallas_src>

<mosaic_0001>
module attributes {stable_mosaic.version = 11 : i64} {
  func.func @mlp_kernel(%arg0: memref<2x1536xf32, #tpu.memory_space<vmem>>, %arg1: memref<1536x256xbf16, #tpu.memory_space<vmem>>, %arg2: memref<1x256xf32, #tpu.memory_space<vmem>>, %arg3: memref<256x128xbf16, #tpu.memory_space<vmem>>, %arg4: memref<1x128xf32, #tpu.memory_space<vmem>>, %arg5: memref<128x128xbf16, #tpu.memory_space<vmem>>, %arg6: memref<1x128xf32, #tpu.memory_space<vmem>>, %arg7: memref<2x128xf32, #tpu.memory_space<vmem>>) attributes {dimension_semantics = [], scalar_prefetch = 0 : i64, scratch_operands = 0 : i64, tpu.core_type = #tpu.core_type<tc>} {
    %c0 = arith.constant 0 : index
    %c0_0 = arith.constant 0 : index
    %0 = vector.load %arg0[%c0, %c0_0] : memref<2x1536xf32, #tpu.memory_space<vmem>>, vector<2x1536xf32>
    %1 = arith.truncf %0 : vector<2x1536xf32> to vector<2x1536xbf16>
    %c0_1 = arith.constant 0 : index
    %c0_2 = arith.constant 0 : index
    %2 = vector.load %arg1[%c0_1, %c0_2] : memref<1536x256xbf16, #tpu.memory_space<vmem>>, vector<1536x256xbf16>
    %cst = arith.constant dense<0.000000e+00> : vector<2x256xf32>
    %3 = tpu.matmul %1, %2, %cst {dimension_numbers = #tpu.dot_dimension_numbers<[1], [0], [0], [1], [0, 0, 1, 1], [], []>} : vector<2x1536xbf16>, vector<1536x256xbf16>, vector<2x256xf32> -> vector<2x256xf32>
    %c0_3 = arith.constant 0 : index
    %c0_4 = arith.constant 0 : index
    %4 = vector.load %arg2[%c0_3, %c0_4] : memref<1x256xf32, #tpu.memory_space<vmem>>, vector<1x256xf32>
    %5 = vector.broadcast %4 : vector<1x256xf32> to vector<2x256xf32>
    %6 = arith.addf %3, %5 : vector<2x256xf32>
    %cst_5 = arith.constant 0.000000e+00 : f32
    %7 = vector.broadcast %cst_5 : f32 to vector<2x256xf32>
    %8 = arith.maximumf %6, %7 : vector<2x256xf32>
    %9 = arith.truncf %8 : vector<2x256xf32> to vector<2x256xbf16>
    %c0_6 = arith.constant 0 : index
    %c0_7 = arith.constant 0 : index
    %10 = vector.load %arg3[%c0_6, %c0_7] : memref<256x128xbf16, #tpu.memory_space<vmem>>, vector<256x128xbf16>
    %cst_8 = arith.constant dense<0.000000e+00> : vector<2x128xf32>
    %11 = tpu.matmul %9, %10, %cst_8 {dimension_numbers = #tpu.dot_dimension_numbers<[1], [0], [0], [1], [0, 0, 1, 1], [], []>} : vector<2x256xbf16>, vector<256x128xbf16>, vector<2x128xf32> -> vector<2x128xf32>
    %c0_9 = arith.constant 0 : index
    %c0_10 = arith.constant 0 : index
    %12 = vector.load %arg4[%c0_9, %c0_10] : memref<1x128xf32, #tpu.memory_space<vmem>>, vector<1x128xf32>
    %13 = vector.broadcast %12 : vector<1x128xf32> to vector<2x128xf32>
    %14 = arith.addf %11, %13 : vector<2x128xf32>
    %cst_11 = arith.constant 0.000000e+00 : f32
    %15 = vector.broadcast %cst_11 : f32 to vector<2x128xf32>
    %16 = arith.maximumf %14, %15 : vector<2x128xf32>
    %17 = arith.truncf %16 : vector<2x128xf32> to vector<2x128xbf16>
    %c0_12 = arith.constant 0 : index
    %c0_13 = arith.constant 0 : index
    %18 = vector.load %arg5[%c0_12, %c0_13] : memref<128x128xbf16, #tpu.memory_space<vmem>>, vector<128x128xbf16>
    %cst_14 = arith.constant dense<0.000000e+00> : vector<2x128xf32>
    %19 = tpu.matmul %17, %18, %cst_14 {dimension_numbers = #tpu.dot_dimension_numbers<[1], [0], [0], [1], [0, 0, 1, 1], [], []>} : vector<2x128xbf16>, vector<128x128xbf16>, vector<2x128xf32> -> vector<2x128xf32>
    %c0_15 = arith.constant 0 : index
    %c0_16 = arith.constant 0 : index
    %20 = vector.load %arg6[%c0_15, %c0_16] : memref<1x128xf32, #tpu.memory_space<vmem>>, vector<1x128xf32>
    %21 = vector.broadcast %20 : vector<1x128xf32> to vector<2x128xf32>
    %22 = arith.addf %19, %21 : vector<2x128xf32>
    %c0_17 = arith.constant 0 : index
    %c0_18 = arith.constant 0 : index
    %23 = vector.load %arg7[%c0_17, %c0_18] : memref<2x128xf32, #tpu.memory_space<vmem>>, vector<2x128xf32>
    tpu.vector_store %arg7[%c0_17, %c0_18], %22 {strides = array<i32>} : memref<2x128xf32, #tpu.memory_space<vmem>>, vector<2x128xf32>,
    return
  }
}

</mosaic_0001>

<llo_original>
// kernel: tpu_custom_call.1
$region0: #{tpu_custom_call.1}
  #allocation0 [shape = 'u32[]', space=smem, size = 0x4, offset = 0x4, fixed_abs, tag = 'smem constant byte address 0x4 - core index']
  #allocation1 [shape = 'u32[144,128]{1,0:T(1,128)}', space=vmem, size = 0x12000, scoped, tag = 'internal scratch']
  %s0 = inlined_call_operand.hbm [shape: f32[2,1536], index: 0, kind: input, shape index: {}]
  %s1 = inlined_call_operand.hbm [shape: bf16[1536,256], index: 1, kind: input, shape index: {}]
  %s2 = inlined_call_operand.vmem [shape: f32[1,256], index: 2, kind: input, shape index: {}]
  %s3 = inlined_call_operand.hbm [shape: bf16[256,128], index: 3, kind: input, shape index: {}]
  %s4 = inlined_call_operand.vmem [shape: f32[1,128], index: 4, kind: input, shape index: {}]
  %s5 = inlined_call_operand.hbm [shape: bf16[128,128], index: 5, kind: input, shape index: {}]
  %s6 = inlined_call_operand.vmem [shape: f32[1,128], index: 6, kind: input, shape index: {}]
  %s7 = inlined_call_operand.hbm [shape: f32[2,128], index: 7, kind: output, shape index: {}]
  %s8 = sld [smem:[#allocation0]]
  $region54: #{tpu_custom_call.1} parent=0
    _
  %s10 = ssub.s32 1, %s8
  %s11 = scalar_select 0, %s10, %s8
  $region1: #{tpu_custom_call.1} parent=0
    #allocation2 [shape = 'u8[12288]{0}', space=vmem, size = 0x3000, scoped, tag = 'input window, operand 0, single buffered']
    #allocation3 [shape = 's32[1]{0}', space=sflag, size = 0x4, scoped, tag = 'scoped memory for tpu_custom_call.1']
    #allocation4 [shape = 's32[1]{0}', space=sflag, size = 0x4, scoped, tag = 'scoped memory for tpu_custom_call.1']
    #allocation5 [shape = 'u8[786432]{0}', space=vmem, size = 0xc0000, scoped, tag = 'input window, operand 1, single buffered']
    #allocation6 [shape = 's32[1]{0}', space=sflag, size = 0x4, scoped, tag = 'scoped memory for tpu_custom_call.1']
    #allocation7 [shape = 'u8[65536]{0}', space=vmem, size = 0x10000, scoped, tag = 'input window, operand 3, single buffered']
    #allocation8 [shape = 'u8[32768]{0}', space=vmem, size = 0x8000, scoped, tag = 'input window, operand 5, single buffered']
    #allocation9 [shape = 's32[1]{0}', space=sflag, size = 0x4, scoped, tag = 'scoped memory for tpu_custom_call.1']
    #allocation10 [shape = 'u8[1024]{0}', space=vmem, size = 0x400, scoped, tag = 'output window, operand 0, single buffered']
    %12 = vsyncpa [#allocation3], 0
    %13 = vsyncpa [#allocation6], 0
    %14 = vsyncpa [#allocation9], 0
    %15 = vsyncpa [#allocation4], 0
    // Predicated region
    $region2: #{tpu_custom_call.1} parent=1 // pred_check
      _
    $region3: #{tpu_custom_call.1} parent=1 // pred_check_branch
      %17 = sbr.rel (0) target = $region5
    $region4: #{tpu_custom_call.1} parent=1 // pred_region
      %s19 = ssub.s32 384, 384
      %20 = vsyncadd [#allocation3], %s19
      %s22 = sshll.u32 [#allocation2], 4
      %s23 = int_to_ptr.vmem [resolvable:$true] %s22
      %25 = dma.hbm_to_vmem [thread:$0]  %s0, 384, %s23, [#allocation3]
    $region5: #{tpu_custom_call.1} parent=1 // pred_fallthru
      _
    // Predicated region
    $region6: #{tpu_custom_call.1} parent=1 // pred_check
      _
    $region7: #{tpu_custom_call.1} parent=1 // pred_check_branch
      %27 = sbr.rel (0) target = $region9
    $region8: #{tpu_custom_call.1} parent=1 // pred_region
      %s29 = ssub.s32 24576, 24576
      %30 = vsyncadd [#allocation6], %s29
      %s31 = sshll.u32 [#allocation5], 4
      %s32 = int_to_ptr.vmem [resolvable:$true] %s31
      %37 = dma.hbm_to_vmem [thread:$0]  %s1, 24576, %s32, [#allocation6], 128, 128, 8
    $region9: #{tpu_custom_call.1} parent=1 // pred_fallthru
      _
    // Predicated region
    $region10: #{tpu_custom_call.1} parent=1 // pred_check
      _
    $region11: #{tpu_custom_call.1} parent=1 // pred_check_branch
      %39 = sbr.rel (0) target = $region13
    $region12: #{tpu_custom_call.1} parent=1 // pred_region
      _
    $region13: #{tpu_custom_call.1} parent=1 // pred_fallthru
      _
    // Predicated region
    $region14: #{tpu_custom_call.1} parent=1 // pred_check
      _
    $region15: #{tpu_custom_call.1} parent=1 // pred_check_branch
      %41 = sbr.rel (0) target = $region17
    $region16: #{tpu_custom_call.1} parent=1 // pred_region
      %s43 = ssub.s32 2048, 2048
      %44 = vsyncadd [#allocation6], %s43
      %s45 = sshll.u32 [#allocation7], 4
      %s46 = int_to_ptr.vmem [resolvable:$true] %s45
      %51 = dma.hbm_to_vmem [thread:$0]  %s3, 2048, %s46, [#allocation6], 64, 64, 4
    $region17: #{tpu_custom_call.1} parent=1 // pred_fallthru
      _
    // Predicated region
    $region18: #{tpu_custom_call.1} parent=1 // pred_check
      _
    $region19: #{tpu_custom_call.1} parent=1 // pred_check_branch
      %53 = sbr.rel (0) target = $region21
    $region20: #{tpu_custom_call.1} parent=1 // pred_region
      _
    $region21: #{tpu_custom_call.1} parent=1 // pred_fallthru
      _
    // Predicated region
    $region22: #{tpu_custom_call.1} parent=1 // pred_check
      _
    $region23: #{tpu_custom_call.1} parent=1 // pred_check_branch
      %55 = sbr.rel (0) target = $region25
    $region24: #{tpu_custom_call.1} parent=1 // pred_region
      %s57 = ssub.s32 1024, 1024
      %58 = vsyncadd [#allocation9], %s57
      %s59 = sshll.u32 [#allocation8], 4
      %s60 = int_to_ptr.vmem [resolvable:$true] %s59
      %65 = dma.hbm_to_vmem [thread:$0]  %s5, 1024, %s60, [#allocation9], 64, 64, 4
    $region25: #{tpu_custom_call.1} parent=1 // pred_fallthru
      _
    // Predicated region
    $region26: #{tpu_custom_call.1} parent=1 // pred_check
      _
    $region27: #{tpu_custom_call.1} parent=1 // pred_check_branch
      %67 = sbr.rel (0) target = $region29
    $region28: #{tpu_custom_call.1} parent=1 // pred_region
      _
    $region29: #{tpu_custom_call.1} parent=1 // pred_fallthru
      _
    // Predicated region
    $region30: #{tpu_custom_call.1} parent=1 // pred_check
      _
    $region31: #{tpu_custom_call.1} parent=1 // pred_check_branch
      %69 = sbr.rel (0) target = $region33
    $region32: #{tpu_custom_call.1} parent=1 // pred_region
      %70 = dma.done [#allocation3], 384
    $region33: #{tpu_custom_call.1} parent=1 // pred_fallthru
      _
    // Predicated region
    $region34: #{tpu_custom_call.1} parent=1 // pred_check
      _
    $region35: #{tpu_custom_call.1} parent=1 // pred_check_branch
      %72 = sbr.rel (0) target = $region37
    $region36: #{tpu_custom_call.1} parent=1 // pred_region
      %73 = dma.done [#allocation6], 24576
    $region37: #{tpu_custom_call.1} parent=1 // pred_fallthru
      _
    // Predicated region
    $region38: #{tpu_custom_call.1} parent=1 // pred_check
      _
    $region39: #{tpu_custom_call.1} parent=1 // pred_check_branch
      %75 = sbr.rel (0) target = $region41
    $region40: #{tpu_custom_call.1} parent=1 // pred_region
      %76 = dma.done [#allocation6], 2048
    $region41: #{tpu_custom_call.1} parent=1 // pred_fallthru
      _
    // Predicated region
    $region42: #{tpu_custom_call.1} parent=1 // pred_check
      _
    $region43: #{tpu_custom_call.1} parent=1 // pred_check_branch
      %78 = sbr.rel (0) target = $region45
    $region44: #{tpu_custom_call.1} parent=1 // pred_region
      %79 = dma.done [#allocation9], 1024
    $region45: #{tpu_custom_call.1} parent=1 // pred_fallthru
      _
    %v81 = vld [vmem:[#allocation2] sm:$0xff]
    %v82 = vld [vmem:[#allocation2 + $0x8] sm:$0xff]
    %v83 = vld [vmem:[#allocation2 + $0x10] sm:$0xff]
    %v87 = vcombine.high %v81, %v81
    %v89 = vunpack.c.l.s4 1983009808
    %v90 = vunpack.c.0.s8 %v89
    %v91 = vlaneseq
    %v92 = vshrl.u32 %v91, 7
    %v93 = vsub.s32 %v90, %v92
    %v94 = vrot.slane %v81, %v93
    %v96 = vunpack.c.l.s4 1983009808
    %v97 = vunpack.c.0.s8 %v96
    %v98 = vlaneseq
    %v99 = vshrl.u32 %v98, 7
    %v100 = vsub.s32 %v97, %v99
    %v101 = vrot.slane %v87, %v100
    %v102 = vcombine.high %v94, %v94
    %v103 = vcombine.high %v101, %v101
    %v104 = vcombine.high %v82, %v82
    %v106 = vunpack.c.l.s4 1983009808
    %v107 = vunpack.c.0.s8 %v106
    %v108 = vlaneseq
    %v109 = vshrl.u32 %v108, 7
    %v110 = vsub.s32 %v107, %v109
    %v111 = vrot.slane %v82, %v110
    %v113 = vunpack.c.l.s4 1983009808
    %v114 = vunpack.c.0.s8 %v113
    %v115 = vlaneseq
    %v116 = vshrl.u32 %v115, 7
    %v117 = vsub.s32 %v114, %v116
    %v118 = vrot.slane %v104, %v117
    %v119 = vcombine.high %v111, %v111
    %v120 = vcombine.high %v118, %v118
    %v121 = vcombine.high %v83, %v83
    %v123 = vunpack.c.l.s4 1983009808
    %v124 = vunpack.c.0.s8 %v123
    %v125 = vlaneseq
    %v126 = vshrl.u32 %v125, 7
    %v127 = vsub.s32 %v124, %v126
    %v128 = vrot.slane %v83, %v127
    %v130 = vunpack.c.l.s4 1983009808
    %v131 = vunpack.c.0.s8 %v130
    %v132 = vlaneseq
    %v133 = vshrl.u32 %v132, 7
    %v134 = vsub.s32 %v131, %v133
    %v135 = vrot.slane %v121, %v134
    %v136 = vcombine.high %v128, %v128
    %v137 = vcombine.high %v135, %v135
    %v150 = vpack.c.bf16 %v94, %v94
    %v151 = vpack.c.bf16 %v102, %v102
    %v152 = vpack.c.bf16 %v101, %v101
    %v153 = vpack.c.bf16 %v103, %v103
    %v154 = vpack.c.bf16 %v111, %v111
    %v155 = vpack.c.bf16 %v119, %v119
    %v156 = vpack.c.bf16 %v118, %v118
    %v157 = vpack.c.bf16 %v120, %v120
    %v158 = vpack.c.bf16 %v128, %v128
    %v159 = vpack.c.bf16 %v136, %v136
    %v160 = vpack.c.bf16 %v135, %v135
    %v161 = vpack.c.bf16 %v137, %v137
    %v162 = vld [vmem:[#allocation5] sm:$0xff]
    %v163 = vld [vmem:[#allocation5 + $0x8] sm:$0xff]
    %v164 = vld [vmem:[#allocation5 + $0x10] sm:$0xff]
    %v165 = vld [vmem:[#allocation5 + $0x18] sm:$0xff]
    %v166 = vld [vmem:[#allocation5 + $0x20] sm:$0xff]
    %v167 = vld [vmem:[#allocation5 + $0x28] sm:$0xff]
    %v168 = vld [vmem:[#allocation5 + $0x30] sm:$0xff]
    %v169 = vld [vmem:[#allocation5 + $0x38] sm:$0xff]
    %v170 = vld [vmem:[#allocation5 + $0x40] sm:$0xff]
    %v171 = vld [vmem:[#allocation5 + $0x48] sm:$0xff]
    %v172 = vld [vmem:[#allocation5 + $0x50] sm:$0xff]
    %v173 = vld [vmem:[#allocation5 + $0x58] sm:$0xff]
    %v174 = vld [vmem:[#allocation5 + $0x60] sm:$0xff]
    %v175 = vld [vmem:[#allocation5 + $0x68] sm:$0xff]
    %v176 = vld [vmem:[#allocation5 + $0x70] sm:$0xff]
    %v177 = vld [vmem:[#allocation5 + $0x78] sm:$0xff]
    %v178 = vld [vmem:[#allocation5 + $0x80] sm:$0xff]
    %v179 = vld [vmem:[#allocation5 + $0x88] sm:$0xff]
    %v180 = vld [vmem:[#allocation5 + $0x90] sm:$0xff]
    %v181 = vld [vmem:[#allocation5 + $0x98] sm:$0xff]
    %v182 = vld [vmem:[#allocation5 + $0xa0] sm:$0xff]
    %v183 = vld [vmem:[#allocation5 + $0xa8] sm:$0xff]
    %v184 = vld [vmem:[#allocation5 + $0xb0] sm:$0xff]
    %v185 = vld [vmem:[#allocation5 + $0xb8] sm:$0xff]
    %v186 = vld [vmem:[#allocation5 + $0xc0] sm:$0xff]
    %v187 = vld [vmem:[#allocation5 + $0xc8] sm:$0xff]
    %v188 = vld [vmem:[#allocation5 + $0xd0] sm:$0xff]
    %v189 = vld [vmem:[#allocation5 + $0xd8] sm:$0xff]
    %v190 = vld [vmem:[#allocation5 + $0xe0] sm:$0xff]
    %v191 = vld [vmem:[#allocation5 + $0xe8] sm:$0xff]
    %v192 = vld [vmem:[#allocation5 + $0xf0] sm:$0xff]
    %v193 = vld [vmem:[#allocation5 + $0xf8] sm:$0xff]
    %v194 = vld [vmem:[#allocation5 + $0x100] sm:$0xff]
    %v195 = vld [vmem:[#allocation5 + $0x108] sm:$0xff]
    %v196 = vld [vmem:[#allocation5 + $0x110] sm:$0xff]
    %v197 = vld [vmem:[#allocation5 + $0x118] sm:$0xff]
    %v198 = vld [vmem:[#allocation5 + $0x120] sm:$0xff]
    %v199 = vld [vmem:[#allocation5 + $0x128] sm:$0xff]
    %v200 = vld [vmem:[#allocation5 + $0x130] sm:$0xff]
    %v201 = vld [vmem:[#allocation5 + $0x138] sm:$0xff]
    %v202 = vld [vmem:[#allocation5 + $0x140] sm:$0xff]
    %v203 = vld [vmem:[#allocation5 + $0x148] sm:$0xff]
    %v204 = vld [vmem:[#allocation5 + $0x150] sm:$0xff]
    %v205 = vld [vmem:[#allocation5 + $0x158] sm:$0xff]
    %v206 = vld [vmem:[#allocation5 + $0x160] sm:$0xff]
    %v207 = vld [vmem:[#allocation5 + $0x168] sm:$0xff]
    %v208 = vld [vmem:[#allocation5 + $0x170] sm:$0xff]
    %v209 = vld [vmem:[#allocation5 + $0x178] sm:$0xff]
    %v210 = vld [vmem:[#allocation5 + $0x180] sm:$0xff]
    %v211 = vld [vmem:[#allocation5 + $0x188] sm:$0xff]
    %v212 = vld [vmem:[#allocation5 + $0x190] sm:$0xff]
    %v213 = vld [vmem:[#allocation5 + $0x198] sm:$0xff]
    %v214 = vld [vmem:[#allocation5 + $0x1a0] sm:$0xff]
    %v215 = vld [vmem:[#allocation5 + $0x1a8] sm:$0xff]
    %v216 = vld [vmem:[#allocation5 + $0x1b0] sm:$0xff]
    %v217 = vld [vmem:[#allocation5 + $0x1b8] sm:$0xff]
    %v218 = vld [vmem:[#allocation5 + $0x1c0] sm:$0xff]
    %v219 = vld [vmem:[#allocation5 + $0x1c8] sm:$0xff]
    %v220 = vld [vmem:[#allocation5 + $0x1d0] sm:$0xff]
    %v221 = vld [vmem:[#allocation5 + $0x1d8] sm:$0xff]
    %v222 = vld [vmem:[#allocation5 + $0x1e0] sm:$0xff]
    %v223 = vld [vmem:[#allocation5 + $0x1e8] sm:$0xff]
    %v224 = vld [vmem:[#allocation5 + $0x1f0] sm:$0xff]
    %v225 = vld [vmem:[#allocation5 + $0x1f8] sm:$0xff]
    %v226 = vld [vmem:[#allocation5 + $0x200] sm:$0xff]
    %v227 = vld [vmem:[#allocation5 + $0x208] sm:$0xff]
    %v228 = vld [vmem:[#allocation5 + $0x210] sm:$0xff]
    %v229 = vld [vmem:[#allocation5 + $0x218] sm:$0xff]
    %v230 = vld [vmem:[#allocation5 + $0x220] sm:$0xff]
    %v231 = vld [vmem:[#allocation5 + $0x228] sm:$0xff]
    %v232 = vld [vmem:[#allocation5 + $0x230] sm:$0xff]
    %v233 = vld [vmem:[#allocation5 + $0x238] sm:$0xff]
    %v234 = vld [vmem:[#allocation5 + $0x240] sm:$0xff]
    %v235 = vld [vmem:[#allocation5 + $0x248] sm:$0xff]
    %v236 = vld [vmem:[#allocation5 + $0x250] sm:$0xff]
    %v237 = vld [vmem:[#allocation5 + $0x258] sm:$0xff]
    %v238 = vld [vmem:[#allocation5 + $0x260] sm:$0xff]
    %v239 = vld [vmem:[#allocation5 + $0x268] sm:$0xff]
    %v240 = vld [vmem:[#allocation5 + $0x270] sm:$0xff]
    %v241 = vld [vmem:[#allocation5 + $0x278] sm:$0xff]
    %v242 = vld [vmem:[#allocation5 + $0x280] sm:$0xff]
    %v243 = vld [vmem:[#allocation5 + $0x288] sm:$0xff]
    %v244 = vld [vmem:[#allocation5 + $0x290] sm:$0xff]
    %v245 = vld [vmem:[#allocation5 + $0x298] sm:$0xff]
    %v246 = vld [vmem:[#allocation5 + $0x2a0] sm:$0xff]
    %v247 = vld [vmem:[#allocation5 + $0x2a8] sm:$0xff]
    %v248 = vld [vmem:[#allocation5 + $0x2b0] sm:$0xff]
    %v249 = vld [vmem:[#allocation5 + $0x2b8] sm:$0xff]
    %v250 = vld [vmem:[#allocation5 + $0x2c0] sm:$0xff]
    %v251 = vld [vmem:[#allocation5 + $0x2c8] sm:$0xff]
    %v252 = vld [vmem:[#allocation5 + $0x2d0] sm:$0xff]
    %v253 = vld [vmem:[#allocation5 + $0x2d8] sm:$0xff]
    %v254 = vld [vmem:[#allocation5 + $0x2e0] sm:$0xff]
    %v255 = vld [vmem:[#allocation5 + $0x2e8] sm:$0xff]
    %v256 = vld [vmem:[#allocation5 + $0x2f0] sm:$0xff]
    %v257 = vld [vmem:[#allocation5 + $0x2f8] sm:$0xff]
    %v258 = vld [vmem:[#allocation5 + $0x300] sm:$0xff]
    %v259 = vld [vmem:[#allocation5 + $0x308] sm:$0xff]
    %v260 = vld [vmem:[#allocation5 + $0x310] sm:$0xff]
    %v261 = vld [vmem:[#allocation5 + $0x318] sm:$0xff]
    %v262 = vld [vmem:[#allocation5 + $0x320] sm:$0xff]
    %v263 = vld [vmem:[#allocation5 + $0x328] sm:$0xff]
    %v264 = vld [vmem:[#allocation5 + $0x330] sm:$0xff]
    %v265 = vld [vmem:[#allocation5 + $0x338] sm:$0xff]
    %v266 = vld [vmem:[#allocation5 + $0x340] sm:$0xff]
    %v267 = vld [vmem:[#allocation5 + $0x348] sm:$0xff]
    %v268 = vld [vmem:[#allocation5 + $0x350] sm:$0xff]
    %v269 = vld [vmem:[#allocation5 + $0x358] sm:$0xff]
    %v270 = vld [vmem:[#allocation5 + $0x360] sm:$0xff]
    %v271 = vld [vmem:[#allocation5 + $0x368] sm:$0xff]
    %v272 = vld [vmem:[#allocation5 + $0x370] sm:$0xff]
    %v273 = vld [vmem:[#allocation5 + $0x378] sm:$0xff]
    %v274 = vld [vmem:[#allocation5 + $0x380] sm:$0xff]
    %v275 = vld [vmem:[#allocation5 + $0x388] sm:$0xff]
    %v276 = vld [vmem:[#allocation5 + $0x390] sm:$0xff]
    %v277 = vld [vmem:[#allocation5 + $0x398] sm:$0xff]
    %v278 = vld [vmem:[#allocation5 + $0x3a0] sm:$0xff]
    %v279 = vld [vmem:[#allocation5 + $0x3a8] sm:$0xff]
    %v280 = vld [vmem:[#allocation5 + $0x3b0] sm:$0xff]
    %v281 = vld [vmem:[#allocation5 + $0x3b8] sm:$0xff]
    %v282 = vld [vmem:[#allocation5 + $0x3c0] sm:$0xff]
    %v283 = vld [vmem:[#allocation5 + $0x3c8] sm:$0xff]
    %v284 = vld [vmem:[#allocation5 + $0x3d0] sm:$0xff]
    %v285 = vld [vmem:[#allocation5 + $0x3d8] sm:$0xff]
    %v286 = vld [vmem:[#allocation5 + $0x3e0] sm:$0xff]
    %v287 = vld [vmem:[#allocation5 + $0x3e8] sm:$0xff]
    %v288 = vld [vmem:[#allocation5 + $0x3f0] sm:$0xff]
    %v289 = vld [vmem:[#allocation5 + $0x3f8] sm:$0xff]
    %v290 = vld [vmem:[#allocation5 + $0x400] sm:$0xff]
    %v291 = vld [vmem:[#allocation5 + $0x408] sm:$0xff]
    %v292 = vld [vmem:[#allocation5 + $0x410] sm:$0xff]
    %v293 = vld [vmem:[#allocation5 + $0x418] sm:$0xff]
    %v294 = vld [vmem:[#allocation5 + $0x420] sm:$0xff]
    %v295 = vld [vmem:[#allocation5 + $0x428] sm:$0xff]
    %v296 = vld [vmem:[#allocation5 + $0x430] sm:$0xff]
    %v297 = vld [vmem:[#allocation5 + $0x438] sm:$0xff]
    %v298 = vld [vmem:[#allocation5 + $0x440] sm:$0xff]
    %v299 = vld [vmem:[#allocation5 + $0x448] sm:$0xff]
    %v300 = vld [vmem:[#allocation5 + $0x450] sm:$0xff]
    %v301 = vld [vmem:[#allocation5 + $0x458] sm:$0xff]
    %v302 = vld [vmem:[#allocation5 + $0x460] sm:$0xff]
    %v303 = vld [vmem:[#allocation5 + $0x468] sm:$0xff]
    %v304 = vld [vmem:[#allocation5 + $0x470] sm:$0xff]
    %v305 = vld [vmem:[#allocation5 + $0x478] sm:$0xff]
    %v306 = vld [vmem:[#allocation5 + $0x480] sm:$0xff]
    %v307 = vld [vmem:[#allocation5 + $0x488] sm:$0xff]
    %v308 = vld [vmem:[#allocation5 + $0x490] sm:$0xff]
    %v309 = vld [vmem:[#allocation5 + $0x498] sm:$0xff]
    %v310 = vld [vmem:[#allocation5 + $0x4a0] sm:$0xff]
    %v311 = vld [vmem:[#allocation5 + $0x4a8] sm:$0xff]
    %v312 = vld [vmem:[#allocation5 + $0x4b0] sm:$0xff]
    %v313 = vld [vmem:[#allocation5 + $0x4b8] sm:$0xff]
    %v314 = vld [vmem:[#allocation5 + $0x4c0] sm:$0xff]
    %v315 = vld [vmem:[#allocation5 + $0x4c8] sm:$0xff]
    %v316 = vld [vmem:[#allocation5 + $0x4d0] sm:$0xff]
    %v317 = vld [vmem:[#allocation5 + $0x4d8] sm:$0xff]
    %v318 = vld [vmem:[#allocation5 + $0x4e0] sm:$0xff]
    %v319 = vld [vmem:[#allocation5 + $0x4e8] sm:$0xff]
    %v320 = vld [vmem:[#allocation5 + $0x4f0] sm:$0xff]
    %v321 = vld [vmem:[#allocation5 + $0x4f8] sm:$0xff]
    %v322 = vld [vmem:[#allocation5 + $0x500] sm:$0xff]
    %v323 = vld [vmem:[#allocation5 + $0x508] sm:$0xff]
    %v324 = vld [vmem:[#allocation5 + $0x510] sm:$0xff]
    %v325 = vld [vmem:[#allocation5 + $0x518] sm:$0xff]
    %v326 = vld [vmem:[#allocation5 + $0x520] sm:$0xff]
    %v327 = vld [vmem:[#allocation5 + $0x528] sm:$0xff]
    %v328 = vld [vmem:[#allocation5 + $0x530] sm:$0xff]
    %v329 = vld [vmem:[#allocation5 + $0x538] sm:$0xff]
    %v330 = vld [vmem:[#allocation5 + $0x540] sm:$0xff]
    %v331 = vld [vmem:[#allocation5 + $0x548] sm:$0xff]
    %v332 = vld [vmem:[#allocation5 + $0x550] sm:$0xff]
    %v333 = vld [vmem:[#allocation5 + $0x558] sm:$0xff]
    %v334 = vld [vmem:[#allocation5 + $0x560] sm:$0xff]
    %v335 = vld [vmem:[#allocation5 + $0x568] sm:$0xff]
    %v336 = vld [vmem:[#allocation5 + $0x570] sm:$0xff]
    %v337 = vld [vmem:[#allocation5 + $0x578] sm:$0xff]
    %v338 = vld [vmem:[#allocation5 + $0x580] sm:$0xff]
    %v339 = vld [vmem:[#allocation5 + $0x588] sm:$0xff]
    %v340 = vld [vmem:[#allocation5 + $0x590] sm:$0xff]
    %v341 = vld [vmem:[#allocation5 + $0x598] sm:$0xff]
    %v342 = vld [vmem:[#allocation5 + $0x5a0] sm:$0xff]
    %v343 = vld [vmem:[#allocation5 + $0x5a8] sm:$0xff]
    %v344 = vld [vmem:[#allocation5 + $0x5b0] sm:$0xff]
    %v345 = vld [vmem:[#allocation5 + $0x5b8] sm:$0xff]
    %v346 = vld [vmem:[#allocation5 + $0x5c0] sm:$0xff]
    %v347 = vld [vmem:[#allocation5 + $0x5c8] sm:$0xff]
    %v348 = vld [vmem:[#allocation5 + $0x5d0] sm:$0xff]
    %v349 = vld [vmem:[#allocation5 + $0x5d8] sm:$0xff]
    %v350 = vld [vmem:[#allocation5 + $0x5e0] sm:$0xff]
    %v351 = vld [vmem:[#allocation5 + $0x5e8] sm:$0xff]
    %v352 = vld [vmem:[#allocation5 + $0x5f0] sm:$0xff]
    %v353 = vld [vmem:[#allocation5 + $0x5f8] sm:$0xff]
    %v354 = vld [vmem:[%s2] sm:$0x3]
    %v356 = vlaneseq
    %v357 = vshrl.u32 %v356, 7
    %v358 = vsub.s32 0, %v357
    %v359 = vrot.slane %v354, %v358
    %v360 = vlaneseq
    %v361 = vshrl.u32 %v360, 7
    %v362 = vsub.s32 1, %v361
    %v363 = vrot.slane %v354, %v362
    %v558 = vunpack.c.l.b16 %v162
    %v559 = vunpack.c.h.b16 %v162
    %v560 = vunpack.c.l.b16 %v163
    %v561 = vunpack.c.h.b16 %v163
    %v562 = vunpack.c.l.b16 %v164
    %v563 = vunpack.c.h.b16 %v164
    %v564 = vunpack.c.l.b16 %v165
    %v565 = vunpack.c.h.b16 %v165
    %v566 = vunpack.c.l.b16 %v166
    %v567 = vunpack.c.h.b16 %v166
    %v568 = vunpack.c.l.b16 %v167
    %v569 = vunpack.c.h.b16 %v167
    %v570 = vunpack.c.l.b16 %v168
    %v571 = vunpack.c.h.b16 %v168
    %v572 = vunpack.c.l.b16 %v169
    %v573 = vunpack.c.h.b16 %v169
    %v574 = vunpack.c.l.b16 %v170
    %v575 = vunpack.c.h.b16 %v170
    %v576 = vunpack.c.l.b16 %v171
    %v577 = vunpack.c.h.b16 %v171
    %v578 = vunpack.c.l.b16 %v172
    %v579 = vunpack.c.h.b16 %v172
    %v580 = vunpack.c.l.b16 %v173
    %v581 = vunpack.c.h.b16 %v173
    %v582 = vunpack.c.l.b16 %v174
    %v583 = vunpack.c.h.b16 %v174
    %v584 = vunpack.c.l.b16 %v175
    %v585 = vunpack.c.h.b16 %v175
    %v586 = vunpack.c.l.b16 %v176
    %v587 = vunpack.c.h.b16 %v176
    %v588 = vunpack.c.l.b16 %v177
    %v589 = vunpack.c.h.b16 %v177
    %v590 = vunpack.c.l.b16 %v178
    %v591 = vunpack.c.h.b16 %v178
    %v592 = vunpack.c.l.b16 %v179
    %v593 = vunpack.c.h.b16 %v179
    %v594 = vunpack.c.l.b16 %v180
    %v595 = vunpack.c.h.b16 %v180
    %v596 = vunpack.c.l.b16 %v181
    %v597 = vunpack.c.h.b16 %v181
    %v598 = vunpack.c.l.b16 %v182
    %v599 = vunpack.c.h.b16 %v182
    %v600 = vunpack.c.l.b16 %v183
    %v601 = vunpack.c.h.b16 %v183
    %v602 = vunpack.c.l.b16 %v184
    %v603 = vunpack.c.h.b16 %v184
    %v604 = vunpack.c.l.b16 %v185
    %v605 = vunpack.c.h.b16 %v185
    %v606 = vunpack.c.l.b16 %v186
    %v607 = vunpack.c.h.b16 %v186
    %v608 = vunpack.c.l.b16 %v187
    %v609 = vunpack.c.h.b16 %v187
    %v610 = vunpack.c.l.b16 %v188
    %v611 = vunpack.c.h.b16 %v188
    %v612 = vunpack.c.l.b16 %v189
    %v613 = vunpack.c.h.b16 %v189
    %v614 = vunpack.c.l.b16 %v190
    %v615 = vunpack.c.h.b16 %v190
    %v616 = vunpack.c.l.b16 %v191
    %v617 = vunpack.c.h.b16 %v191
    %v618 = vunpack.c.l.b16 %v192
    %v619 = vunpack.c.h.b16 %v192
    %v620 = vunpack.c.l.b16 %v193
    %v621 = vunpack.c.h.b16 %v193
    %v622 = vunpack.c.l.b16 %v194
    %v623 = vunpack.c.h.b16 %v194
    %v624 = vunpack.c.l.b16 %v195
    %v625 = vunpack.c.h.b16 %v195
    %v626 = vunpack.c.l.b16 %v196
    %v627 = vunpack.c.h.b16 %v196
    %v628 = vunpack.c.l.b16 %v197
    %v629 = vunpack.c.h.b16 %v197
    %v630 = vunpack.c.l.b16 %v198
    %v631 = vunpack.c.h.b16 %v198
    %v632 = vunpack.c.l.b16 %v199
    %v633 = vunpack.c.h.b16 %v199
    %v634 = vunpack.c.l.b16 %v200
    %v635 = vunpack.c.h.b16 %v200
    %v636 = vunpack.c.l.b16 %v201
    %v637 = vunpack.c.h.b16 %v201
    %v638 = vunpack.c.l.b16 %v202
    %v639 = vunpack.c.h.b16 %v202
    %v640 = vunpack.c.l.b16 %v203
    %v641 = vunpack.c.h.b16 %v203
    %v642 = vunpack.c.l.b16 %v204
    %v643 = vunpack.c.h.b16 %v204
    %v644 = vunpack.c.l.b16 %v205
    %v645 = vunpack.c.h.b16 %v205
    %v646 = vunpack.c.l.b16 %v206
    %v647 = vunpack.c.h.b16 %v206
    %v648 = vunpack.c.l.b16 %v207
    %v649 = vunpack.c.h.b16 %v207
    %v650 = vunpack.c.l.b16 %v208
    %v651 = vunpack.c.h.b16 %v208
    %v652 = vunpack.c.l.b16 %v209
    %v653 = vunpack.c.h.b16 %v209
    %v654 = vunpack.c.l.b16 %v210
    %v655 = vunpack.c.h.b16 %v210
    %v656 = vunpack.c.l.b16 %v211
    %v657 = vunpack.c.h.b16 %v211
    %v658 = vunpack.c.l.b16 %v212
    %v659 = vunpack.c.h.b16 %v212
    %v660 = vunpack.c.l.b16 %v213
    %v661 = vunpack.c.h.b16 %v213
    %v662 = vunpack.c.l.b16 %v214
    %v663 = vunpack.c.h.b16 %v214
    %v664 = vunpack.c.l.b16 %v215
    %v665 = vunpack.c.h.b16 %v215
    %v666 = vunpack.c.l.b16 %v216
    %v667 = vunpack.c.h.b16 %v216
    %v668 = vunpack.c.l.b16 %v217
    %v669 = vunpack.c.h.b16 %v217
    %v670 = vunpack.c.l.b16 %v218
    %v671 = vunpack.c.h.b16 %v218
    %v672 = vunpack.c.l.b16 %v219
    %v673 = vunpack.c.h.b16 %v219
    %v674 = vunpack.c.l.b16 %v220
    %v675 = vunpack.c.h.b16 %v220
    %v676 = vunpack.c.l.b16 %v221
    %v677 = vunpack.c.h.b16 %v221
    %v678 = vunpack.c.l.b16 %v222
    %v679 = vunpack.c.h.b16 %v222
    %v680 = vunpack.c.l.b16 %v223
    %v681 = vunpack.c.h.b16 %v223
    %v682 = vunpack.c.l.b16 %v224
    %v683 = vunpack.c.h.b16 %v224
    %v684 = vunpack.c.l.b16 %v225
    %v685 = vunpack.c.h.b16 %v225
    %v686 = vunpack.c.l.b16 %v226
    %v687 = vunpack.c.h.b16 %v226
    %v688 = vunpack.c.l.b16 %v227
    %v689 = vunpack.c.h.b16 %v227
    %v690 = vunpack.c.l.b16 %v228
    %v691 = vunpack.c.h.b16 %v228
    %v692 = vunpack.c.l.b16 %v229
    %v693 = vunpack.c.h.b16 %v229
    %v694 = vunpack.c.l.b16 %v230
    %v695 = vunpack.c.h.b16 %v230
    %v696 = vunpack.c.l.b16 %v231
    %v697 = vunpack.c.h.b16 %v231
    %v698 = vunpack.c.l.b16 %v232
    %v699 = vunpack.c.h.b16 %v232
    %v700 = vunpack.c.l.b16 %v233
    %v701 = vunpack.c.h.b16 %v233
    %v702 = vunpack.c.l.b16 %v234
    %v703 = vunpack.c.h.b16 %v234
    %v704 = vunpack.c.l.b16 %v235
    %v705 = vunpack.c.h.b16 %v235
    %v706 = vunpack.c.l.b16 %v236
    %v707 = vunpack.c.h.b16 %v236
    %v708 = vunpack.c.l.b16 %v237
    %v709 = vunpack.c.h.b16 %v237
    %v710 = vunpack.c.l.b16 %v238
    %v711 = vunpack.c.h.b16 %v238
    %v712 = vunpack.c.l.b16 %v239
    %v713 = vunpack.c.h.b16 %v239
    %v714 = vunpack.c.l.b16 %v240
    %v715 = vunpack.c.h.b16 %v240
    %v716 = vunpack.c.l.b16 %v241
    %v717 = vunpack.c.h.b16 %v241
    %v718 = vunpack.c.l.b16 %v242
    %v719 = vunpack.c.h.b16 %v242
    %v720 = vunpack.c.l.b16 %v243
    %v721 = vunpack.c.h.b16 %v243
    %v722 = vunpack.c.l.b16 %v244
    %v723 = vunpack.c.h.b16 %v244
    %v724 = vunpack.c.l.b16 %v245
    %v725 = vunpack.c.h.b16 %v245
    %v726 = vunpack.c.l.b16 %v246
    %v727 = vunpack.c.h.b16 %v246
    %v728 = vunpack.c.l.b16 %v247
    %v729 = vunpack.c.h.b16 %v247
    %v730 = vunpack.c.l.b16 %v248
    %v731 = vunpack.c.h.b16 %v248
    %v732 = vunpack.c.l.b16 %v249
    %v733 = vunpack.c.h.b16 %v249
    %v734 = vunpack.c.l.b16 %v250
    %v735 = vunpack.c.h.b16 %v250
    %v736 = vunpack.c.l.b16 %v251
    %v737 = vunpack.c.h.b16 %v251
    %v738 = vunpack.c.l.b16 %v252
    %v739 = vunpack.c.h.b16 %v252
    %v740 = vunpack.c.l.b16 %v253
    %v741 = vunpack.c.h.b16 %v253
    %v742 = vunpack.c.l.b16 %v254
    %v743 = vunpack.c.h.b16 %v254
    %v744 = vunpack.c.l.b16 %v255
    %v745 = vunpack.c.h.b16 %v255
    %v746 = vunpack.c.l.b16 %v256
    %v747 = vunpack.c.h.b16 %v256
    %v748 = vunpack.c.l.b16 %v257
    %v749 = vunpack.c.h.b16 %v257
    %v750 = vunpack.c.l.b16 %v258
    %v751 = vunpack.c.h.b16 %v258
    %v752 = vunpack.c.l.b16 %v259
    %v753 = vunpack.c.h.b16 %v259
    %v754 = vunpack.c.l.b16 %v260
    %v755 = vunpack.c.h.b16 %v260
    %v756 = vunpack.c.l.b16 %v261
    %v757 = vunpack.c.h.b16 %v261
    %v758 = vunpack.c.l.b16 %v262
    %v759 = vunpack.c.h.b16 %v262
    %v760 = vunpack.c.l.b16 %v263
    %v761 = vunpack.c.h.b16 %v263
    %v762 = vunpack.c.l.b16 %v264
    %v763 = vunpack.c.h.b16 %v264
    %v764 = vunpack.c.l.b16 %v265
    %v765 = vunpack.c.h.b16 %v265
    %v766 = vunpack.c.l.b16 %v266
    %v767 = vunpack.c.h.b16 %v266
    %v768 = vunpack.c.l.b16 %v267
    %v769 = vunpack.c.h.b16 %v267
    %v770 = vunpack.c.l.b16 %v268
    %v771 = vunpack.c.h.b16 %v268
    %v772 = vunpack.c.l.b16 %v269
    %v773 = vunpack.c.h.b16 %v269
    %v774 = vunpack.c.l.b16 %v270
    %v775 = vunpack.c.h.b16 %v270
    %v776 = vunpack.c.l.b16 %v271
    %v777 = vunpack.c.h.b16 %v271
    %v778 = vunpack.c.l.b16 %v272
    %v779 = vunpack.c.h.b16 %v272
    %v780 = vunpack.c.l.b16 %v273
    %v781 = vunpack.c.h.b16 %v273
    %v782 = vunpack.c.l.b16 %v274
    %v783 = vunpack.c.h.b16 %v274
    %v784 = vunpack.c.l.b16 %v275
    %v785 = vunpack.c.h.b16 %v275
    %v786 = vunpack.c.l.b16 %v276
    %v787 = vunpack.c.h.b16 %v276
    %v788 = vunpack.c.l.b16 %v277
    %v789 = vunpack.c.h.b16 %v277
    %v790 = vunpack.c.l.b16 %v278
    %v791 = vunpack.c.h.b16 %v278
    %v792 = vunpack.c.l.b16 %v279
    %v793 = vunpack.c.h.b16 %v279
    %v794 = vunpack.c.l.b16 %v280
    %v795 = vunpack.c.h.b16 %v280
    %v796 = vunpack.c.l.b16 %v281
    %v797 = vunpack.c.h.b16 %v281
    %v798 = vunpack.c.l.b16 %v282
    %v799 = vunpack.c.h.b16 %v282
    %v800 = vunpack.c.l.b16 %v283
    %v801 = vunpack.c.h.b16 %v283
    %v802 = vunpack.c.l.b16 %v284
    %v803 = vunpack.c.h.b16 %v284
    %v804 = vunpack.c.l.b16 %v285
    %v805 = vunpack.c.h.b16 %v285
    %v806 = vunpack.c.l.b16 %v286
    %v807 = vunpack.c.h.b16 %v286
    %v808 = vunpack.c.l.b16 %v287
    %v809 = vunpack.c.h.b16 %v287
    %v810 = vunpack.c.l.b16 %v288
    %v811 = vunpack.c.h.b16 %v288
    %v812 = vunpack.c.l.b16 %v289
    %v813 = vunpack.c.h.b16 %v289
    %v814 = vunpack.c.l.b16 %v290
    %v815 = vunpack.c.h.b16 %v290
    %v816 = vunpack.c.l.b16 %v291
    %v817 = vunpack.c.h.b16 %v291
    %v818 = vunpack.c.l.b16 %v292
    %v819 = vunpack.c.h.b16 %v292
    %v820 = vunpack.c.l.b16 %v293
    %v821 = vunpack.c.h.b16 %v293
    %v822 = vunpack.c.l.b16 %v294
    %v823 = vunpack.c.h.b16 %v294
    %v824 = vunpack.c.l.b16 %v295
    %v825 = vunpack.c.h.b16 %v295
    %v826 = vunpack.c.l.b16 %v296
    %v827 = vunpack.c.h.b16 %v296
    %v828 = vunpack.c.l.b16 %v297
    %v829 = vunpack.c.h.b16 %v297
    %v830 = vunpack.c.l.b16 %v298
    %v831 = vunpack.c.h.b16 %v298
    %v832 = vunpack.c.l.b16 %v299
    %v833 = vunpack.c.h.b16 %v299
    %v834 = vunpack.c.l.b16 %v300
    %v835 = vunpack.c.h.b16 %v300
    %v836 = vunpack.c.l.b16 %v301
    %v837 = vunpack.c.h.b16 %v301
    %v838 = vunpack.c.l.b16 %v302
    %v839 = vunpack.c.h.b16 %v302
    %v840 = vunpack.c.l.b16 %v303
    %v841 = vunpack.c.h.b16 %v303
    %v842 = vunpack.c.l.b16 %v304
    %v843 = vunpack.c.h.b16 %v304
    %v844 = vunpack.c.l.b16 %v305
    %v845 = vunpack.c.h.b16 %v305
    %v846 = vunpack.c.l.b16 %v306
    %v847 = vunpack.c.h.b16 %v306
    %v848 = vunpack.c.l.b16 %v307
    %v849 = vunpack.c.h.b16 %v307
    %v850 = vunpack.c.l.b16 %v308
    %v851 = vunpack.c.h.b16 %v308
    %v852 = vunpack.c.l.b16 %v309
    %v853 = vunpack.c.h.b16 %v309
    %v854 = vunpack.c.l.b16 %v310
    %v855 = vunpack.c.h.b16 %v310
    %v856 = vunpack.c.l.b16 %v311
    %v857 = vunpack.c.h.b16 %v311
    %v858 = vunpack.c.l.b16 %v312
    %v859 = vunpack.c.h.b16 %v312
    %v860 = vunpack.c.l.b16 %v313
    %v861 = vunpack.c.h.b16 %v313
    %v862 = vunpack.c.l.b16 %v314
    %v863 = vunpack.c.h.b16 %v314
    %v864 = vunpack.c.l.b16 %v315
    %v865 = vunpack.c.h.b16 %v315
    %v866 = vunpack.c.l.b16 %v316
    %v867 = vunpack.c.h.b16 %v316
    %v868 = vunpack.c.l.b16 %v317
    %v869 = vunpack.c.h.b16 %v317
    %v870 = vunpack.c.l.b16 %v318
    %v871 = vunpack.c.h.b16 %v318
    %v872 = vunpack.c.l.b16 %v319
    %v873 = vunpack.c.h.b16 %v319
    %v874 = vunpack.c.l.b16 %v320
    %v875 = vunpack.c.h.b16 %v320
    %v876 = vunpack.c.l.b16 %v321
    %v877 = vunpack.c.h.b16 %v321
    %v878 = vunpack.c.l.b16 %v322
    %v879 = vunpack.c.h.b16 %v322
    %v880 = vunpack.c.l.b16 %v323
    %v881 = vunpack.c.h.b16 %v323
    %v882 = vunpack.c.l.b16 %v324
    %v883 = vunpack.c.h.b16 %v324
    %v884 = vunpack.c.l.b16 %v325
    %v885 = vunpack.c.h.b16 %v325
    %v886 = vunpack.c.l.b16 %v326
    %v887 = vunpack.c.h.b16 %v326
    %v888 = vunpack.c.l.b16 %v327
    %v889 = vunpack.c.h.b16 %v327
    %v890 = vunpack.c.l.b16 %v328
    %v891 = vunpack.c.h.b16 %v328
    %v892 = vunpack.c.l.b16 %v329
    %v893 = vunpack.c.h.b16 %v329
    %v894 = vunpack.c.l.b16 %v330
    %v895 = vunpack.c.h.b16 %v330
    %v896 = vunpack.c.l.b16 %v331
    %v897 = vunpack.c.h.b16 %v331
    %v898 = vunpack.c.l.b16 %v332
    %v899 = vunpack.c.h.b16 %v332
    %v900 = vunpack.c.l.b16 %v333
    %v901 = vunpack.c.h.b16 %v333
    %v902 = vunpack.c.l.b16 %v334
    %v903 = vunpack.c.h.b16 %v334
    %v904 = vunpack.c.l.b16 %v335
    %v905 = vunpack.c.h.b16 %v335
    %v906 = vunpack.c.l.b16 %v336
    %v907 = vunpack.c.h.b16 %v336
    %v908 = vunpack.c.l.b16 %v337
    %v909 = vunpack.c.h.b16 %v337
    %v910 = vunpack.c.l.b16 %v338
    %v911 = vunpack.c.h.b16 %v338
    %v912 = vunpack.c.l.b16 %v339
    %v913 = vunpack.c.h.b16 %v339
    %v914 = vunpack.c.l.b16 %v340
    %v915 = vunpack.c.h.b16 %v340
    %v916 = vunpack.c.l.b16 %v341
    %v917 = vunpack.c.h.b16 %v341
    %v918 = vunpack.c.l.b16 %v342
    %v919 = vunpack.c.h.b16 %v342
    %v920 = vunpack.c.l.b16 %v343
    %v921 = vunpack.c.h.b16 %v343
    %v922 = vunpack.c.l.b16 %v344
    %v923 = vunpack.c.h.b16 %v344
    %v924 = vunpack.c.l.b16 %v345
    %v925 = vunpack.c.h.b16 %v345
    %v926 = vunpack.c.l.b16 %v346
    %v927 = vunpack.c.h.b16 %v346
    %v928 = vunpack.c.l.b16 %v347
    %v929 = vunpack.c.h.b16 %v347
    %v930 = vunpack.c.l.b16 %v348
    %v931 = vunpack.c.h.b16 %v348
    %v932 = vunpack.c.l.b16 %v349
    %v933 = vunpack.c.h.b16 %v349
    %v934 = vunpack.c.l.b16 %v350
    %v935 = vunpack.c.h.b16 %v350
    %v936 = vunpack.c.l.b16 %v351
    %v937 = vunpack.c.h.b16 %v351
    %v938 = vunpack.c.l.b16 %v352
    %v939 = vunpack.c.h.b16 %v352
    %v940 = vunpack.c.l.b16 %v353
    %v941 = vunpack.c.h.b16 %v353
    %v942 = vpack.c.b16 %v560, %v558
    %v943 = vpack.c.b16 %v561, %v559
    %v944 = vpack.c.b16 %v564, %v562
    %v945 = vpack.c.b16 %v565, %v563
    %v946 = vpack.c.b16 %v568, %v566
    %v947 = vpack.c.b16 %v569, %v567
    %v948 = vpack.c.b16 %v572, %v570
    %v949 = vpack.c.b16 %v573, %v571
    %v950 = vpack.c.b16 %v576, %v574
    %v951 = vpack.c.b16 %v577, %v575
    %v952 = vpack.c.b16 %v580, %v578
    %v953 = vpack.c.b16 %v581, %v579
    %v954 = vpack.c.b16 %v584, %v582
    %v955 = vpack.c.b16 %v585, %v583
    %v956 = vpack.c.b16 %v588, %v586
    %v957 = vpack.c.b16 %v589, %v587
    %v958 = vpack.c.b16 %v592, %v590
    %v959 = vpack.c.b16 %v593, %v591
    %v960 = vpack.c.b16 %v596, %v594
    %v961 = vpack.c.b16 %v597, %v595
    %v962 = vpack.c.b16 %v600, %v598
    %v963 = vpack.c.b16 %v601, %v599
    %v964 = vpack.c.b16 %v604, %v602
    %v965 = vpack.c.b16 %v605, %v603
    %v966 = vpack.c.b16 %v608, %v606
    %v967 = vpack.c.b16 %v609, %v607
    %v968 = vpack.c.b16 %v612, %v610
    %v969 = vpack.c.b16 %v613, %v611
    %v970 = vpack.c.b16 %v616, %v614
    %v971 = vpack.c.b16 %v617, %v615
    %v972 = vpack.c.b16 %v620, %v618
    %v973 = vpack.c.b16 %v621, %v619
    %v974 = vpack.c.b16 %v624, %v622
    %v975 = vpack.c.b16 %v625, %v623
    %v976 = vpack.c.b16 %v628, %v626
    %v977 = vpack.c.b16 %v629, %v627
    %v978 = vpack.c.b16 %v632, %v630
    %v979 = vpack.c.b16 %v633, %v631
    %v980 = vpack.c.b16 %v636, %v634
    %v981 = vpack.c.b16 %v637, %v635
    %v982 = vpack.c.b16 %v640, %v638
    %v983 = vpack.c.b16 %v641, %v639
    %v984 = vpack.c.b16 %v644, %v642
    %v985 = vpack.c.b16 %v645, %v643
    %v986 = vpack.c.b16 %v648, %v646
    %v987 = vpack.c.b16 %v649, %v647
    %v988 = vpack.c.b16 %v652, %v650
    %v989 = vpack.c.b16 %v653, %v651
    %v990 = vpack.c.b16 %v656, %v654
    %v991 = vpack.c.b16 %v657, %v655
    %v992 = vpack.c.b16 %v660, %v658
    %v993 = vpack.c.b16 %v661, %v659
    %v994 = vpack.c.b16 %v664, %v662
    %v995 = vpack.c.b16 %v665, %v663
    %v996 = vpack.c.b16 %v668, %v666
    %v997 = vpack.c.b16 %v669, %v667
    %v998 = vpack.c.b16 %v672, %v670
    %v999 = vpack.c.b16 %v673, %v671
    %v1000 = vpack.c.b16 %v676, %v674
    %v1001 = vpack.c.b16 %v677, %v675
    %v1002 = vpack.c.b16 %v680, %v678
    %v1003 = vpack.c.b16 %v681, %v679
    %v1004 = vpack.c.b16 %v684, %v682
    %v1005 = vpack.c.b16 %v685, %v683
    %v1006 = vpack.c.b16 %v688, %v686
    %v1007 = vpack.c.b16 %v689, %v687
    %v1008 = vpack.c.b16 %v692, %v690
    %v1009 = vpack.c.b16 %v693, %v691
    %v1010 = vpack.c.b16 %v696, %v694
    %v1011 = vpack.c.b16 %v697, %v695
    %v1012 = vpack.c.b16 %v700, %v698
    %v1013 = vpack.c.b16 %v701, %v699
    %v1014 = vpack.c.b16 %v704, %v702
    %v1015 = vpack.c.b16 %v705, %v703
    %v1016 = vpack.c.b16 %v708, %v706
    %v1017 = vpack.c.b16 %v709, %v707
    %v1018 = vpack.c.b16 %v712, %v710
    %v1019 = vpack.c.b16 %v713, %v711
    %v1020 = vpack.c.b16 %v716, %v714
    %v1021 = vpack.c.b16 %v717, %v715
    %v1022 = vpack.c.b16 %v720, %v718
    %v1023 = vpack.c.b16 %v721, %v719
    %v1024 = vpack.c.b16 %v724, %v722
    %v1025 = vpack.c.b16 %v725, %v723
    %v1026 = vpack.c.b16 %v728, %v726
    %v1027 = vpack.c.b16 %v729, %v727
    %v1028 = vpack.c.b16 %v732, %v730
    %v1029 = vpack.c.b16 %v733, %v731
    %v1030 = vpack.c.b16 %v736, %v734
    %v1031 = vpack.c.b16 %v737, %v735
    %v1032 = vpack.c.b16 %v740, %v738
    %v1033 = vpack.c.b16 %v741, %v739
    %v1034 = vpack.c.b16 %v744, %v742
    %v1035 = vpack.c.b16 %v745, %v743
    %v1036 = vpack.c.b16 %v748, %v746
    %v1037 = vpack.c.b16 %v749, %v747
    %v1038 = vpack.c.b16 %v752, %v750
    %v1039 = vpack.c.b16 %v753, %v751
    %v1040 = vpack.c.b16 %v756, %v754
    %v1041 = vpack.c.b16 %v757, %v755
    %v1042 = vpack.c.b16 %v760, %v758
    %v1043 = vpack.c.b16 %v761, %v759
    %v1044 = vpack.c.b16 %v764, %v762
    %v1045 = vpack.c.b16 %v765, %v763
    %v1046 = vpack.c.b16 %v768, %v766
    %v1047 = vpack.c.b16 %v769, %v767
    %v1048 = vpack.c.b16 %v772, %v770
    %v1049 = vpack.c.b16 %v773, %v771
    %v1050 = vpack.c.b16 %v776, %v774
    %v1051 = vpack.c.b16 %v777, %v775
    %v1052 = vpack.c.b16 %v780, %v778
    %v1053 = vpack.c.b16 %v781, %v779
    %v1054 = vpack.c.b16 %v784, %v782
    %v1055 = vpack.c.b16 %v785, %v783
    %v1056 = vpack.c.b16 %v788, %v786
    %v1057 = vpack.c.b16 %v789, %v787
    %v1058 = vpack.c.b16 %v792, %v790
    %v1059 = vpack.c.b16 %v793, %v791
    %v1060 = vpack.c.b16 %v796, %v794
    %v1061 = vpack.c.b16 %v797, %v795
    %v1062 = vpack.c.b16 %v800, %v798
    %v1063 = vpack.c.b16 %v801, %v799
    %v1064 = vpack.c.b16 %v804, %v802
    %v1065 = vpack.c.b16 %v805, %v803
    %v1066 = vpack.c.b16 %v808, %v806
    %v1067 = vpack.c.b16 %v809, %v807
    %v1068 = vpack.c.b16 %v812, %v810
    %v1069 = vpack.c.b16 %v813, %v811
    %v1070 = vpack.c.b16 %v816, %v814
    %v1071 = vpack.c.b16 %v817, %v815
    %v1072 = vpack.c.b16 %v820, %v818
    %v1073 = vpack.c.b16 %v821, %v819
    %v1074 = vpack.c.b16 %v824, %v822
    %v1075 = vpack.c.b16 %v825, %v823
    %v1076 = vpack.c.b16 %v828, %v826
    %v1077 = vpack.c.b16 %v829, %v827
    %v1078 = vpack.c.b16 %v832, %v830
    %v1079 = vpack.c.b16 %v833, %v831
    %v1080 = vpack.c.b16 %v836, %v834
    %v1081 = vpack.c.b16 %v837, %v835
    %v1082 = vpack.c.b16 %v840, %v838
    %v1083 = vpack.c.b16 %v841, %v839
    %v1084 = vpack.c.b16 %v844, %v842
    %v1085 = vpack.c.b16 %v845, %v843
    %v1086 = vpack.c.b16 %v848, %v846
    %v1087 = vpack.c.b16 %v849, %v847
    %v1088 = vpack.c.b16 %v852, %v850
    %v1089 = vpack.c.b16 %v853, %v851
    %v1090 = vpack.c.b16 %v856, %v854
    %v1091 = vpack.c.b16 %v857, %v855
    %v1092 = vpack.c.b16 %v860, %v858
    %v1093 = vpack.c.b16 %v861, %v859
    %v1094 = vpack.c.b16 %v864, %v862
    %v1095 = vpack.c.b16 %v865, %v863
    %v1096 = vpack.c.b16 %v868, %v866
    %v1097 = vpack.c.b16 %v869, %v867
    %v1098 = vpack.c.b16 %v872, %v870
    %v1099 = vpack.c.b16 %v873, %v871
    %v1100 = vpack.c.b16 %v876, %v874
    %v1101 = vpack.c.b16 %v877, %v875
    %v1102 = vpack.c.b16 %v880, %v878
    %v1103 = vpack.c.b16 %v881, %v879
    %v1104 = vpack.c.b16 %v884, %v882
    %v1105 = vpack.c.b16 %v885, %v883
    %v1106 = vpack.c.b16 %v888, %v886
    %v1107 = vpack.c.b16 %v889, %v887
    %v1108 = vpack.c.b16 %v892, %v890
    %v1109 = vpack.c.b16 %v893, %v891
    %v1110 = vpack.c.b16 %v896, %v894
    %v1111 = vpack.c.b16 %v897, %v895
    %v1112 = vpack.c.b16 %v900, %v898
    %v1113 = vpack.c.b16 %v901, %v899
    %v1114 = vpack.c.b16 %v904, %v902
    %v1115 = vpack.c.b16 %v905, %v903
    %v1116 = vpack.c.b16 %v908, %v906
    %v1117 = vpack.c.b16 %v909, %v907
    %v1118 = vpack.c.b16 %v912, %v910
    %v1119 = vpack.c.b16 %v913, %v911
    %v1120 = vpack.c.b16 %v916, %v914
    %v1121 = vpack.c.b16 %v917, %v915
    %v1122 = vpack.c.b16 %v920, %v918
    %v1123 = vpack.c.b16 %v921, %v919
    %v1124 = vpack.c.b16 %v924, %v922
    %v1125 = vpack.c.b16 %v925, %v923
    %v1126 = vpack.c.b16 %v928, %v926
    %v1127 = vpack.c.b16 %v929, %v927
    %v1128 = vpack.c.b16 %v932, %v930
    %v1129 = vpack.c.b16 %v933, %v931
    %v1130 = vpack.c.b16 %v936, %v934
    %v1131 = vpack.c.b16 %v937, %v935
    %v1132 = vpack.c.b16 %v940, %v938
    %v1133 = vpack.c.b16 %v941, %v939
    %1326 = vmatprep.subr.bf16.mxu0 %v943
    %1327 = vmatpush1.bf16.msra.mxu0 %v942
    %1328 = vmatprep.subr.bf16.mxu0 %v945
    %1329 = vmatpush1.bf16.msra.mxu0 %v944
    %1330 = vmatprep.subr.bf16.mxu0 %v947
    %1331 = vmatpush1.bf16.msra.mxu0 %v946
    %1332 = vmatprep.subr.bf16.mxu0 %v949
    %1333 = vmatpush1.bf16.msra.mxu0 %v948
    %1334 = vmatprep.subr.bf16.mxu0 %v951
    %1335 = vmatpush1.bf16.msra.mxu0 %v950
    %1336 = vmatprep.subr.bf16.mxu0 %v953
    %1337 = vmatpush1.bf16.msra.mxu0 %v952
    %1338 = vmatprep.subr.bf16.mxu0 %v955
    %1339 = vmatpush1.bf16.msra.mxu0 %v954
    %1340 = vmatprep.subr.bf16.mxu0 %v957
    %1341 = vmatpush1.bf16.msra.mxu0 %v956
    %1342 = vmatprep.subr.bf16.mxu0 %v959
    %1343 = vmatpush1.bf16.msra.mxu0 %v958
    %1344 = vmatprep.subr.bf16.mxu0 %v961
    %1345 = vmatpush1.bf16.msra.mxu0 %v960
    %1346 = vmatprep.subr.bf16.mxu0 %v963
    %1347 = vmatpush1.bf16.msra.mxu0 %v962
    %1348 = vmatprep.subr.bf16.mxu0 %v965
    %1349 = vmatpush1.bf16.msra.mxu0 %v964
    %1350 = vmatprep.subr.bf16.mxu0 %v967
    %1351 = vmatpush1.bf16.msra.mxu0 %v966
    %1352 = vmatprep.subr.bf16.mxu0 %v969
    %1353 = vmatpush1.bf16.msra.mxu0 %v968
    %1354 = vmatprep.subr.bf16.mxu0 %v971
    %1355 = vmatpush1.bf16.msra.mxu0 %v970
    %1356 = vmatprep.subr.bf16.mxu0 %v973
    %1357 = vmatpush1.bf16.msra.mxu0 %v972
    %1358 = vmatprep.mubr.bf16.mxu0 %v151
    %1359 = vmatmul.mubr.bf16.gmra.mrb[0].mxu0 %v150
    %v1360 = vpop.f32.mrb[0].mxu0
    %v1361 = vadd.f32 %v359, %v1360
    %v1362 = vpop.f32.mrb[0].mxu0
    %v1363 = vadd.f32 %v363, %v1362
    %v1364 = vpop.f32.mrb[0].mxu0
    %v1365 = vpop.f32.mrb[0].mxu0
    %1366 = vdwg.mxu0
    %1367 = vmatprep.subr.bf16.mxu0 %v975
    %1368 = vmatpush1.bf16.msra.mxu0 %v974
    %1369 = vmatprep.subr.bf16.mxu0 %v977
    %1370 = vmatpush1.bf16.msra.mxu0 %v976
    %1371 = vmatprep.subr.bf16.mxu0 %v979
    %1372 = vmatpush1.bf16.msra.mxu0 %v978
    %1373 = vmatprep.subr.bf16.mxu0 %v981
    %1374 = vmatpush1.bf16.msra.mxu0 %v980
    %1375 = vmatprep.subr.bf16.mxu0 %v983
    %1376 = vmatpush1.bf16.msra.mxu0 %v982
    %1377 = vmatprep.subr.bf16.mxu0 %v985
    %1378 = vmatpush1.bf16.msra.mxu0 %v984
    %1379 = vmatprep.subr.bf16.mxu0 %v987
    %1380 = vmatpush1.bf16.msra.mxu0 %v986
    %1381 = vmatprep.subr.bf16.mxu0 %v989
    %1382 = vmatpush1.bf16.msra.mxu0 %v988
    %1383 = vmatprep.subr.bf16.mxu0 %v991
    %1384 = vmatpush1.bf16.msra.mxu0 %v990
    %1385 = vmatprep.subr.bf16.mxu0 %v993
    %1386 = vmatpush1.bf16.msra.mxu0 %v992
    %1387 = vmatprep.subr.bf16.mxu0 %v995
    %1388 = vmatpush1.bf16.msra.mxu0 %v994
    %1389 = vmatprep.subr.bf16.mxu0 %v997
    %1390 = vmatpush1.bf16.msra.mxu0 %v996
    %1391 = vmatprep.subr.bf16.mxu0 %v999
    %1392 = vmatpush1.bf16.msra.mxu0 %v998
    %1393 = vmatprep.subr.bf16.mxu0 %v1001
    %1394 = vmatpush1.bf16.msra.mxu0 %v1000
    %1395 = vmatprep.subr.bf16.mxu0 %v1003
    %1396 = vmatpush1.bf16.msra.mxu0 %v1002
    %1397 = vmatprep.subr.bf16.mxu0 %v1005
    %1398 = vmatpush1.bf16.msra.mxu0 %v1004
    %1399 = vmatprep.mubr.bf16.mxu0 %v153
    %1400 = vmatmul.mubr.bf16.gmra.mrb[0].mxu0 %v152
    %v1401 = vpop.f32.mrb[0].mxu0
    %v1402 = vadd.f32 %v1361, %v1401
    %v1403 = vpop.f32.mrb[0].mxu0
    %v1404 = vadd.f32 %v1363, %v1403
    %v1405 = vpop.f32.mrb[0].mxu0
    %v1406 = vpop.f32.mrb[0].mxu0
    %1407 = vdwg.mxu0
    %1408 = vmatprep.subr.bf16.mxu0 %v1007
    %1409 = vmatpush1.bf16.msra.mxu0 %v1006
    %1410 = vmatprep.subr.bf16.mxu0 %v1009
    %1411 = vmatpush1.bf16.msra.mxu0 %v1008
    %1412 = vmatprep.subr.bf16.mxu0 %v1011
    %1413 = vmatpush1.bf16.msra.mxu0 %v1010
    %1414 = vmatprep.subr.bf16.mxu0 %v1013
    %1415 = vmatpush1.bf16.msra.mxu0 %v1012
    %1416 = vmatprep.subr.bf16.mxu0 %v1015
    %1417 = vmatpush1.bf16.msra.mxu0 %v1014
    %1418 = vmatprep.subr.bf16.mxu0 %v1017
    %1419 = vmatpush1.bf16.msra.mxu0 %v1016
    %1420 = vmatprep.subr.bf16.mxu0 %v1019
    %1421 = vmatpush1.bf16.msra.mxu0 %v1018
    %1422 = vmatprep.subr.bf16.mxu0 %v1021
    %1423 = vmatpush1.bf16.msra.mxu0 %v1020
    %1424 = vmatprep.subr.bf16.mxu0 %v1023
    %1425 = vmatpush1.bf16.msra.mxu0 %v1022
    %1426 = vmatprep.subr.bf16.mxu0 %v1025
    %1427 = vmatpush1.bf16.msra.mxu0 %v1024
    %1428 = vmatprep.subr.bf16.mxu0 %v1027
    %1429 = vmatpush1.bf16.msra.mxu0 %v1026
    %1430 = vmatprep.subr.bf16.mxu0 %v1029
    %1431 = vmatpush1.bf16.msra.mxu0 %v1028
    %1432 = vmatprep.subr.bf16.mxu0 %v1031
    %1433 = vmatpush1.bf16.msra.mxu0 %v1030
    %1434 = vmatprep.subr.bf16.mxu0 %v1033
    %1435 = vmatpush1.bf16.msra.mxu0 %v1032
    %1436 = vmatprep.subr.bf16.mxu0 %v1035
    %1437 = vmatpush1.bf16.msra.mxu0 %v1034
    %1438 = vmatprep.subr.bf16.mxu0 %v1037
    %1439 = vmatpush1.bf16.msra.mxu0 %v1036
    %1440 = vmatprep.mubr.bf16.mxu0 %v155
    %1441 = vmatmul.mubr.bf16.gmra.mrb[0].mxu0 %v154
    %v1442 = vpop.f32.mrb[0].mxu0
    %v1443 = vadd.f32 %v1402, %v1442
    %v1444 = vpop.f32.mrb[0].mxu0
    %v1445 = vadd.f32 %v1404, %v1444
    %v1446 = vpop.f32.mrb[0].mxu0
    %v1447 = vpop.f32.mrb[0].mxu0
    %1448 = vdwg.mxu0
    %1449 = vmatprep.subr.bf16.mxu0 %v1039
    %1450 = vmatpush1.bf16.msra.mxu0 %v1038
    %1451 = vmatprep.subr.bf16.mxu0 %v1041
    %1452 = vmatpush1.bf16.msra.mxu0 %v1040
    %1453 = vmatprep.subr.bf16.mxu0 %v1043
    %1454 = vmatpush1.bf16.msra.mxu0 %v1042
    %1455 = vmatprep.subr.bf16.mxu0 %v1045
    %1456 = vmatpush1.bf16.msra.mxu0 %v1044
    %1457 = vmatprep.subr.bf16.mxu0 %v1047
    %1458 = vmatpush1.bf16.msra.mxu0 %v1046
    %1459 = vmatprep.subr.bf16.mxu0 %v1049
    %1460 = vmatpush1.bf16.msra.mxu0 %v1048
    %1461 = vmatprep.subr.bf16.mxu0 %v1051
    %1462 = vmatpush1.bf16.msra.mxu0 %v1050
    %1463 = vmatprep.subr.bf16.mxu0 %v1053
    %1464 = vmatpush1.bf16.msra.mxu0 %v1052
    %1465 = vmatprep.subr.bf16.mxu0 %v1055
    %1466 = vmatpush1.bf16.msra.mxu0 %v1054
    %1467 = vmatprep.subr.bf16.mxu0 %v1057
    %1468 = vmatpush1.bf16.msra.mxu0 %v1056
    %1469 = vmatprep.subr.bf16.mxu0 %v1059
    %1470 = vmatpush1.bf16.msra.mxu0 %v1058
    %1471 = vmatprep.subr.bf16.mxu0 %v1061
    %1472 = vmatpush1.bf16.msra.mxu0 %v1060
    %1473 = vmatprep.subr.bf16.mxu0 %v1063
    %1474 = vmatpush1.bf16.msra.mxu0 %v1062
    %1475 = vmatprep.subr.bf16.mxu0 %v1065
    %1476 = vmatpush1.bf16.msra.mxu0 %v1064
    %1477 = vmatprep.subr.bf16.mxu0 %v1067
    %1478 = vmatpush1.bf16.msra.mxu0 %v1066
    %1479 = vmatprep.subr.bf16.mxu0 %v1069
    %1480 = vmatpush1.bf16.msra.mxu0 %v1068
    %1481 = vmatprep.mubr.bf16.mxu0 %v157
    %1482 = vmatmul.mubr.bf16.gmra.mrb[0].mxu0 %v156
    %v1483 = vpop.f32.mrb[0].mxu0
    %v1484 = vadd.f32 %v1443, %v1483
    %v1485 = vpop.f32.mrb[0].mxu0
    %v1486 = vadd.f32 %v1445, %v1485
    %v1487 = vpop.f32.mrb[0].mxu0
    %v1488 = vpop.f32.mrb[0].mxu0
    %1489 = vdwg.mxu0
    %1490 = vmatprep.subr.bf16.mxu0 %v1071
    %1491 = vmatpush1.bf16.msra.mxu0 %v1070
    %1492 = vmatprep.subr.bf16.mxu0 %v1073
    %1493 = vmatpush1.bf16.msra.mxu0 %v1072
    %1494 = vmatprep.subr.bf16.mxu0 %v1075
    %1495 = vmatpush1.bf16.msra.mxu0 %v1074
    %1496 = vmatprep.subr.bf16.mxu0 %v1077
    %1497 = vmatpush1.bf16.msra.mxu0 %v1076
    %1498 = vmatprep.subr.bf16.mxu0 %v1079
    %1499 = vmatpush1.bf16.msra.mxu0 %v1078
    %1500 = vmatprep.subr.bf16.mxu0 %v1081
    %1501 = vmatpush1.bf16.msra.mxu0 %v1080
    %1502 = vmatprep.subr.bf16.mxu0 %v1083
    %1503 = vmatpush1.bf16.msra.mxu0 %v1082
    %1504 = vmatprep.subr.bf16.mxu0 %v1085
    %1505 = vmatpush1.bf16.msra.mxu0 %v1084
    %1506 = vmatprep.subr.bf16.mxu0 %v1087
    %1507 = vmatpush1.bf16.msra.mxu0 %v1086
    %1508 = vmatprep.subr.bf16.mxu0 %v1089
    %1509 = vmatpush1.bf16.msra.mxu0 %v1088
    %1510 = vmatprep.subr.bf16.mxu0 %v1091
    %1511 = vmatpush1.bf16.msra.mxu0 %v1090
    %1512 = vmatprep.subr.bf16.mxu0 %v1093
    %1513 = vmatpush1.bf16.msra.mxu0 %v1092
    %1514 = vmatprep.subr.bf16.mxu0 %v1095
    %1515 = vmatpush1.bf16.msra.mxu0 %v1094
    %1516 = vmatprep.subr.bf16.mxu0 %v1097
    %1517 = vmatpush1.bf16.msra.mxu0 %v1096
    %1518 = vmatprep.subr.bf16.mxu0 %v1099
    %1519 = vmatpush1.bf16.msra.mxu0 %v1098
    %1520 = vmatprep.subr.bf16.mxu0 %v1101
    %1521 = vmatpush1.bf16.msra.mxu0 %v1100
    %1522 = vmatprep.mubr.bf16.mxu0 %v159
    %1523 = vmatmul.mubr.bf16.gmra.mrb[0].mxu0 %v158
    %v1524 = vpop.f32.mrb[0].mxu0
    %v1525 = vadd.f32 %v1484, %v1524
    %v1526 = vpop.f32.mrb[0].mxu0
    %v1527 = vadd.f32 %v1486, %v1526
    %v1528 = vpop.f32.mrb[0].mxu0
    %v1529 = vpop.f32.mrb[0].mxu0
    %1530 = vdwg.mxu0
    %1531 = vmatprep.subr.bf16.mxu0 %v1103
    %1532 = vmatpush1.bf16.msra.mxu0 %v1102
    %1533 = vmatprep.subr.bf16.mxu0 %v1105
    %1534 = vmatpush1.bf16.msra.mxu0 %v1104
    %1535 = vmatprep.subr.bf16.mxu0 %v1107
    %1536 = vmatpush1.bf16.msra.mxu0 %v1106
    %1537 = vmatprep.subr.bf16.mxu0 %v1109
    %1538 = vmatpush1.bf16.msra.mxu0 %v1108
    %1539 = vmatprep.subr.bf16.mxu0 %v1111
    %1540 = vmatpush1.bf16.msra.mxu0 %v1110
    %1541 = vmatprep.subr.bf16.mxu0 %v1113
    %1542 = vmatpush1.bf16.msra.mxu0 %v1112
    %1543 = vmatprep.subr.bf16.mxu0 %v1115
    %1544 = vmatpush1.bf16.msra.mxu0 %v1114
    %1545 = vmatprep.subr.bf16.mxu0 %v1117
    %1546 = vmatpush1.bf16.msra.mxu0 %v1116
    %1547 = vmatprep.subr.bf16.mxu0 %v1119
    %1548 = vmatpush1.bf16.msra.mxu0 %v1118
    %1549 = vmatprep.subr.bf16.mxu0 %v1121
    %1550 = vmatpush1.bf16.msra.mxu0 %v1120
    %1551 = vmatprep.subr.bf16.mxu0 %v1123
    %1552 = vmatpush1.bf16.msra.mxu0 %v1122
    %1553 = vmatprep.subr.bf16.mxu0 %v1125
    %1554 = vmatpush1.bf16.msra.mxu0 %v1124
    %1555 = vmatprep.subr.bf16.mxu0 %v1127
    %1556 = vmatpush1.bf16.msra.mxu0 %v1126
    %1557 = vmatprep.subr.bf16.mxu0 %v1129
    %1558 = vmatpush1.bf16.msra.mxu0 %v1128
    %1559 = vmatprep.subr.bf16.mxu0 %v1131
    %1560 = vmatpush1.bf16.msra.mxu0 %v1130
    %1561 = vmatprep.subr.bf16.mxu0 %v1133
    %1562 = vmatpush1.bf16.msra.mxu0 %v1132
    %1563 = vmatprep.mubr.bf16.mxu0 %v161
    %1564 = vmatmul.mubr.bf16.gmra.mrb[0].mxu0 %v160
    %v1565 = vpop.f32.mrb[0].mxu0
    %v1566 = vadd.f32 %v1525, %v1565
    %v1567 = vpop.f32.mrb[0].mxu0
    %v1568 = vadd.f32 %v1527, %v1567
    %v1569 = vpop.f32.mrb[0].mxu0
    %v1570 = vpop.f32.mrb[0].mxu0
    %1571 = vdwg.mxu0
    %v1572 = vmax.f32 %v1566, 0.0
    %v1573 = vmax.f32 %v1568, 0.0
    %v1574 = vpack.c.bf16 %v1572, %v1572
    %v1575 = vpack.c.bf16 %v1573, %v1573
    %v1576 = vld [vmem:[#allocation7] sm:$0xf]
    %v1577 = vld [vmem:[#allocation7 + $0x4] sm:$0xf]
    %v1578 = vld [vmem:[#allocation7 + $0x8] sm:$0xf]
    %v1579 = vld [vmem:[#allocation7 + $0xc] sm:$0xf]
    %v1580 = vld [vmem:[#allocation7 + $0x10] sm:$0xf]
    %v1581 = vld [vmem:[#allocation7 + $0x14] sm:$0xf]
    %v1582 = vld [vmem:[#allocation7 + $0x18] sm:$0xf]
    %v1583 = vld [vmem:[#allocation7 + $0x1c] sm:$0xf]
    %v1584 = vld [vmem:[#allocation7 + $0x20] sm:$0xf]
    %v1585 = vld [vmem:[#allocation7 + $0x24] sm:$0xf]
    %v1586 = vld [vmem:[#allocation7 + $0x28] sm:$0xf]
    %v1587 = vld [vmem:[#allocation7 + $0x2c] sm:$0xf]
    %v1588 = vld [vmem:[#allocation7 + $0x30] sm:$0xf]
    %v1589 = vld [vmem:[#allocation7 + $0x34] sm:$0xf]
    %v1590 = vld [vmem:[#allocation7 + $0x38] sm:$0xf]
    %v1591 = vld [vmem:[#allocation7 + $0x3c] sm:$0xf]
    %v1592 = vld [vmem:[#allocation7 + $0x40] sm:$0xf]
    %v1593 = vld [vmem:[#allocation7 + $0x44] sm:$0xf]
    %v1594 = vld [vmem:[#allocation7 + $0x48] sm:$0xf]
    %v1595 = vld [vmem:[#allocation7 + $0x4c] sm:$0xf]
    %v1596 = vld [vmem:[#allocation7 + $0x50] sm:$0xf]
    %v1597 = vld [vmem:[#allocation7 + $0x54] sm:$0xf]
    %v1598 = vld [vmem:[#allocation7 + $0x58] sm:$0xf]
    %v1599 = vld [vmem:[#allocation7 + $0x5c] sm:$0xf]
    %v1600 = vld [vmem:[#allocation7 + $0x60] sm:$0xf]
    %v1601 = vld [vmem:[#allocation7 + $0x64] sm:$0xf]
    %v1602 = vld [vmem:[#allocation7 + $0x68] sm:$0xf]
    %v1603 = vld [vmem:[#allocation7 + $0x6c] sm:$0xf]
    %v1604 = vld [vmem:[#allocation7 + $0x70] sm:$0xf]
    %v1605 = vld [vmem:[#allocation7 + $0x74] sm:$0xf]
    %v1606 = vld [vmem:[#allocation7 + $0x78] sm:$0xf]
    %v1607 = vld [vmem:[#allocation7 + $0x7c] sm:$0xf]
    %v1608 = vld [vmem:[%s4] sm:$0x1]
    %v1610 = vlaneseq
    %v1611 = vshrl.u32 %v1610, 7
    %v1612 = vsub.s32 0, %v1611
    %v1613 = vrot.slane %v1608, %v1612
    %v1647 = vunpack.c.l.b16 %v1576
    %v1648 = vunpack.c.l.b16 %v1577
    %v1649 = vunpack.c.l.b16 %v1578
    %v1650 = vunpack.c.l.b16 %v1579
    %v1651 = vunpack.c.l.b16 %v1580
    %v1652 = vunpack.c.l.b16 %v1581
    %v1653 = vunpack.c.l.b16 %v1582
    %v1654 = vunpack.c.l.b16 %v1583
    %v1655 = vunpack.c.l.b16 %v1584
    %v1656 = vunpack.c.l.b16 %v1585
    %v1657 = vunpack.c.l.b16 %v1586
    %v1658 = vunpack.c.l.b16 %v1587
    %v1659 = vunpack.c.l.b16 %v1588
    %v1660 = vunpack.c.l.b16 %v1589
    %v1661 = vunpack.c.l.b16 %v1590
    %v1662 = vunpack.c.l.b16 %v1591
    %v1663 = vunpack.c.l.b16 %v1592
    %v1664 = vunpack.c.l.b16 %v1593
    %v1665 = vunpack.c.l.b16 %v1594
    %v1666 = vunpack.c.l.b16 %v1595
    %v1667 = vunpack.c.l.b16 %v1596
    %v1668 = vunpack.c.l.b16 %v1597
    %v1669 = vunpack.c.l.b16 %v1598
    %v1670 = vunpack.c.l.b16 %v1599
    %v1671 = vunpack.c.l.b16 %v1600
    %v1672 = vunpack.c.l.b16 %v1601
    %v1673 = vunpack.c.l.b16 %v1602
    %v1674 = vunpack.c.l.b16 %v1603
    %v1675 = vunpack.c.l.b16 %v1604
    %v1676 = vunpack.c.l.b16 %v1605
    %v1677 = vunpack.c.l.b16 %v1606
    %v1678 = vunpack.c.l.b16 %v1607
    %v1679 = vpack.c.b16 %v1648, %v1647
    %v1680 = vpack.c.b16 %v1650, %v1649
    %v1681 = vpack.c.b16 %v1652, %v1651
    %v1682 = vpack.c.b16 %v1654, %v1653
    %v1683 = vpack.c.b16 %v1656, %v1655
    %v1684 = vpack.c.b16 %v1658, %v1657
    %v1685 = vpack.c.b16 %v1660, %v1659
    %v1686 = vpack.c.b16 %v1662, %v1661
    %v1687 = vpack.c.b16 %v1664, %v1663
    %v1688 = vpack.c.b16 %v1666, %v1665
    %v1689 = vpack.c.b16 %v1668, %v1667
    %v1690 = vpack.c.b16 %v1670, %v1669
    %v1691 = vpack.c.b16 %v1672, %v1671
    %v1692 = vpack.c.b16 %v1674, %v1673
    %v1693 = vpack.c.b16 %v1676, %v1675
    %v1694 = vpack.c.b16 %v1678, %v1677
    %1711 = vmatprep.subr.bf16.mxu0 0
    %1712 = vmatpush1.bf16.msra.mxu0 %v1679
    %1713 = vmatprep.subr.bf16.mxu0 0
    %1714 = vmatpush1.bf16.msra.mxu0 %v1680
    %1715 = vmatprep.subr.bf16.mxu0 0
    %1716 = vmatpush1.bf16.msra.mxu0 %v1681
    %1717 = vmatprep.subr.bf16.mxu0 0
    %1718 = vmatpush1.bf16.msra.mxu0 %v1682
    %1719 = vmatprep.subr.bf16.mxu0 0
    %1720 = vmatpush1.bf16.msra.mxu0 %v1683
    %1721 = vmatprep.subr.bf16.mxu0 0
    %1722 = vmatpush1.bf16.msra.mxu0 %v1684
    %1723 = vmatprep.subr.bf16.mxu0 0
    %1724 = vmatpush1.bf16.msra.mxu0 %v1685
    %1725 = vmatprep.subr.bf16.mxu0 0
    %1726 = vmatpush1.bf16.msra.mxu0 %v1686
    %1727 = vmatprep.subr.bf16.mxu0 0
    %1728 = vmatpush1.bf16.msra.mxu0 %v1687
    %1729 = vmatprep.subr.bf16.mxu0 0
    %1730 = vmatpush1.bf16.msra.mxu0 %v1688
    %1731 = vmatprep.subr.bf16.mxu0 0
    %1732 = vmatpush1.bf16.msra.mxu0 %v1689
    %1733 = vmatprep.subr.bf16.mxu0 0
    %1734 = vmatpush1.bf16.msra.mxu0 %v1690
    %1735 = vmatprep.subr.bf16.mxu0 0
    %1736 = vmatpush1.bf16.msra.mxu0 %v1691
    %1737 = vmatprep.subr.bf16.mxu0 0
    %1738 = vmatpush1.bf16.msra.mxu0 %v1692
    %1739 = vmatprep.subr.bf16.mxu0 0
    %1740 = vmatpush1.bf16.msra.mxu0 %v1693
    %1741 = vmatprep.subr.bf16.mxu0 0
    %1742 = vmatpush1.bf16.msra.mxu0 %v1694
    %1743 = vmatprep.mubr.bf16.mxu0 %v1575
    %1744 = vmatmul.mubr.bf16.gmra.mrb[0].mxu0 %v1574
    %v1745 = vpop.f32.mrb[0].mxu0
    %v1746 = vadd.f32 %v1613, %v1745
    %v1747 = vpop.f32.mrb[0].mxu0
    %v1748 = vpop.f32.mrb[0].mxu0
    %v1749 = vpop.f32.mrb[0].mxu0
    %1750 = vdwg.mxu0
    %v1751 = vmax.f32 %v1746, 0.0
    %v1752 = vpack.c.bf16 %v1751, %v1751
    %v1753 = vld [vmem:[#allocation8] sm:$0xf]
    %v1754 = vld [vmem:[#allocation8 + $0x4] sm:$0xf]
    %v1755 = vld [vmem:[#allocation8 + $0x8] sm:$0xf]
    %v1756 = vld [vmem:[#allocation8 + $0xc] sm:$0xf]
    %v1757 = vld [vmem:[#allocation8 + $0x10] sm:$0xf]
    %v1758 = vld [vmem:[#allocation8 + $0x14] sm:$0xf]
    %v1759 = vld [vmem:[#allocation8 + $0x18] sm:$0xf]
    %v1760 = vld [vmem:[#allocation8 + $0x1c] sm:$0xf]
    %v1761 = vld [vmem:[#allocation8 + $0x20] sm:$0xf]
    %v1762 = vld [vmem:[#allocation8 + $0x24] sm:$0xf]
    %v1763 = vld [vmem:[#allocation8 + $0x28] sm:$0xf]
    %v1764 = vld [vmem:[#allocation8 + $0x2c] sm:$0xf]
    %v1765 = vld [vmem:[#allocation8 + $0x30] sm:$0xf]
    %v1766 = vld [vmem:[#allocation8 + $0x34] sm:$0xf]
    %v1767 = vld [vmem:[#allocation8 + $0x38] sm:$0xf]
    %v1768 = vld [vmem:[#allocation8 + $0x3c] sm:$0xf]
    %v1769 = vld [vmem:[%s6] sm:$0x1]
    %v1771 = vlaneseq
    %v1772 = vshrl.u32 %v1771, 7
    %v1773 = vsub.s32 0, %v1772
    %v1774 = vrot.slane %v1769, %v1773
    %v1792 = vunpack.c.l.b16 %v1753
    %v1793 = vunpack.c.l.b16 %v1754
    %v1794 = vunpack.c.l.b16 %v1755
    %v1795 = vunpack.c.l.b16 %v1756
    %v1796 = vunpack.c.l.b16 %v1757
    %v1797 = vunpack.c.l.b16 %v1758
    %v1798 = vunpack.c.l.b16 %v1759
    %v1799 = vunpack.c.l.b16 %v1760
    %v1800 = vunpack.c.l.b16 %v1761
    %v1801 = vunpack.c.l.b16 %v1762
    %v1802 = vunpack.c.l.b16 %v1763
    %v1803 = vunpack.c.l.b16 %v1764
    %v1804 = vunpack.c.l.b16 %v1765
    %v1805 = vunpack.c.l.b16 %v1766
    %v1806 = vunpack.c.l.b16 %v1767
    %v1807 = vunpack.c.l.b16 %v1768
    %v1808 = vpack.c.b16 %v1793, %v1792
    %v1809 = vpack.c.b16 %v1795, %v1794
    %v1810 = vpack.c.b16 %v1797, %v1796
    %v1811 = vpack.c.b16 %v1799, %v1798
    %v1812 = vpack.c.b16 %v1801, %v1800
    %v1813 = vpack.c.b16 %v1803, %v1802
    %v1814 = vpack.c.b16 %v1805, %v1804
    %v1815 = vpack.c.b16 %v1807, %v1806
    %1824 = vmatprep.subr.bf16.mxu0 0
    %1825 = vmatpush1.bf16.msra.mxu0 %v1808
    %1826 = vmatprep.subr.bf16.mxu0 0
    %1827 = vmatpush1.bf16.msra.mxu0 %v1809
    %1828 = vmatprep.subr.bf16.mxu0 0
    %1829 = vmatpush1.bf16.msra.mxu0 %v1810
    %1830 = vmatprep.subr.bf16.mxu0 0
    %1831 = vmatpush1.bf16.msra.mxu0 %v1811
    %1832 = vmatprep.subr.bf16.mxu0 0
    %1833 = vmatpush1.bf16.msra.mxu0 %v1812
    %1834 = vmatprep.subr.bf16.mxu0 0
    %1835 = vmatpush1.bf16.msra.mxu0 %v1813
    %1836 = vmatprep.subr.bf16.mxu0 0
    %1837 = vmatpush1.bf16.msra.mxu0 %v1814
    %1838 = vmatprep.subr.bf16.mxu0 0
    %1839 = vmatpush1.bf16.msra.mxu0 %v1815
    %1840 = vmatprep.subr.bf16.mxu0 0
    %1841 = vmatpush1.bf16.msra.mxu0 0
    %1842 = vmatprep.subr.bf16.mxu0 0
    %1843 = vmatpush1.bf16.msra.mxu0 0
    %1844 = vmatprep.subr.bf16.mxu0 0
    %1845 = vmatpush1.bf16.msra.mxu0 0
    %1846 = vmatprep.subr.bf16.mxu0 0
    %1847 = vmatpush1.bf16.msra.mxu0 0
    %1848 = vmatprep.subr.bf16.mxu0 0
    %1849 = vmatpush1.bf16.msra.mxu0 0
    %1850 = vmatprep.subr.bf16.mxu0 0
    %1851 = vmatpush1.bf16.msra.mxu0 0
    %1852 = vmatprep.subr.bf16.mxu0 0
    %1853 = vmatpush1.bf16.msra.mxu0 0
    %1854 = vmatprep.subr.bf16.mxu0 0
    %1855 = vmatpush1.bf16.msra.mxu0 0
    %1856 = vmatprep.mubr.bf16.mxu0 0
    %1857 = vmatmul.mubr.bf16.gmra.mrb[0].mxu0 %v1752
    %v1858 = vpop.f32.mrb[0].mxu0
    %v1859 = vadd.f32 %v1774, %v1858
    %v1860 = vpop.f32.mrb[0].mxu0
    %v1861 = vpop.f32.mrb[0].mxu0
    %v1862 = vpop.f32.mrb[0].mxu0
    %1863 = vdwg.mxu0
    %1864 = vst [vmem:[#allocation10] sm:$0x3] %v1859
    // Predicated region
    $region46: #{tpu_custom_call.1} parent=1 // pred_check
      _
    $region47: #{tpu_custom_call.1} parent=1 // pred_check_branch
      %1866 = sbr.rel (0) target = $region49
    $region48: #{tpu_custom_call.1} parent=1 // pred_region
      %s1868 = ssub.s32 32, 32
      %1869 = vsyncadd [#allocation4], %s1868
      %s1871 = sshll.u32 [#allocation10], 4
      %s1872 = int_to_ptr.vmem [resolvable:$true] %s1871
      %1874 = dma.vmem_to_hbm [thread:$0]  %s1872, 32, %s7, [#allocation4]
    $region49: #{tpu_custom_call.1} parent=1 // pred_fallthru
      _
    // Predicated region
    $region50: #{tpu_custom_call.1} parent=1 // pred_check
      _
    $region51: #{tpu_custom_call.1} parent=1 // pred_check_branch
      %1876 = sbr.rel (0) target = $region53
    $region52: #{tpu_custom_call.1} parent=1 // pred_region
      %1877 = dma.done [#allocation4], 32
    $region53: #{tpu_custom_call.1} parent=1 // pred_fallthru
      _
    %1878 = vsyncpa [#allocation3], 1
    %1879 = vsyncpa [#allocation6], 1
    %1880 = vsyncpa [#allocation9], 1
    %1881 = vsyncpa [#allocation4], 1

</llo_original>
